<compile_context>
chip_gen: v5e
topology: v5e:2x2
jax: 0.10.0
libtpu: 0.0.40
codegen_flags: <defaults>
</compile_context>

<pallas_src>
import functools

import jax
import jax.numpy as jnp
from jax.experimental import pallas as pl
from jax.experimental.pallas import tpu as pltpu


# Rows of the packed bias/gain/validity block (shared across batch).
(ROW_B_IN, ROW_G1, ROW_BE1, ROW_G2, ROW_BE2,
 ROW_B1, ROW_B2, ROW_VALID, ROW_MU_B, ROW_SG_B) = range(10)
PACK_ROWS = 16

# Rows of the per-batch token block.
TOK_ROW_VALUE, TOK_ROW_MASK = 0, 1
TOK_ROWS = 8

HEAD_ROWS = 8      # sublane-padded Gaussian head (row 0 = mu, row 1 = sigma)


# ----------------------------------------------------------------------------
# Pallas kernel: embedding + transformer encoder layer + Gaussian sampler
# ----------------------------------------------------------------------------
def tactis_sample_kernel(
    x_ref, tok_ref, noise_ref,
    w_in_ref, w_qkv_ref, w_o_ref, w_ff1_ref, w_ff2_ref, w_head_ref,
    pack_ref,
    out_ref,
    *, d_model: int, d_ff: int,
):
    D, Dff = d_model, d_ff

    pk = pack_ref[...]                                   # [16, L_pad] f32
    b_in = pk[ROW_B_IN:ROW_B_IN + 1, :D]
    g1 = pk[ROW_G1:ROW_G1 + 1, :D]
    be1 = pk[ROW_BE1:ROW_BE1 + 1, :D]
    g2 = pk[ROW_G2:ROW_G2 + 1, :D]
    be2 = pk[ROW_BE2:ROW_BE2 + 1, :D]
    b1 = pk[ROW_B1:ROW_B1 + 1, :Dff]
    b2 = pk[ROW_B2:ROW_B2 + 1, :D]
    valid = pk[ROW_VALID:ROW_VALID + 1, :]               # [1, L_pad], 1 = real token
    mu_b = pk[ROW_MU_B:ROW_MU_B + 1, :]                  # [1, L_pad] (constant per lane)
    sg_b = pk[ROW_SG_B:ROW_SG_B + 1, :]

    def bf16(t):
        return t.astype(jnp.bfloat16)

    def layer_norm(t, g, b):                             # f32 reductions (v5e-safe)
        mu = jnp.mean(t, axis=-1, keepdims=True)
        var = jnp.mean((t - mu) ** 2, axis=-1, keepdims=True)
        return (t - mu) * jax.lax.rsqrt(var + 1e-5) * g + b

    # --- token embedding (inputs arrive already in bf16) ---
    h = jnp.dot(x_ref[...], w_in_ref[...],
                preferred_element_type=jnp.float32) + b_in            # [L, D] f32

    # --- self attention (single head, pre-LN, fused QKV) ---
    a = layer_norm(h, g1, be1)
    qkv = jnp.dot(bf16(a), w_qkv_ref[...],
                  preferred_element_type=jnp.float32)                 # [L, 3D]
    q = qkv[:, 0:D]
    k = qkv[:, D:2 * D]
    v = qkv[:, 2 * D:3 * D]
    scale = 1.0 / (float(D) ** 0.5)
    scores = jax.lax.dot_general(                                     # q @ k^T  (trans_b)
        bf16(q), bf16(k),
        dimension_numbers=(((1,), (1,)), ((), ())),
        preferred_element_type=jnp.float32) * scale                   # [L, L]
    scores = scores + (valid - 1.0) * 1e30                            # mask pad key columns
    scores = scores - jnp.max(scores, axis=-1, keepdims=True)
    p = jnp.exp(scores)
    p = p * pl.reciprocal(jnp.sum(p, axis=-1, keepdims=True), approx=True)
    att = jnp.dot(bf16(p), bf16(v), preferred_element_type=jnp.float32)
    h = h + jnp.dot(bf16(att), w_o_ref[...], preferred_element_type=jnp.float32)

    # --- feed forward (pre-LN) ---
    a2 = layer_norm(h, g2, be2)
    f = jnp.dot(bf16(a2), w_ff1_ref[...], preferred_element_type=jnp.float32) + b1
    f = jnp.maximum(f, 0.0)
    h = h + jnp.dot(bf16(f), w_ff2_ref[...], preferred_element_type=jnp.float32) + b2

    # --- Gaussian sampling head, computed directly transposed: [HEAD_ROWS, L] ---
    head_t = jax.lax.dot_general(                                     # w_head @ h^T
        w_head_ref[...], bf16(h),
        dimension_numbers=(((1,), (1,)), ((), ())),
        preferred_element_type=jnp.float32)                           # [8, L]
    mu_t = head_t[0:1, :] + mu_b                                      # [1, L]
    sg_raw = head_t[1:2, :] + sg_b
    # stable softplus: max(x,0) + log1p(exp(-|x|))
    sigma_t = jnp.maximum(sg_raw, 0.0) + jnp.log1p(jnp.exp(-jnp.abs(sg_raw))) + 1e-3

    val_t = tok_ref[TOK_ROW_VALUE:TOK_ROW_VALUE + 1, :]               # [1, L]
    mask_t = tok_ref[TOK_ROW_MASK:TOK_ROW_MASK + 1, :]                # [1, L]

    pred = mu_t + sigma_t * noise_ref[...]                            # [NS_pad, L], lane-dense
    out_ref[...] = mask_t * val_t + (1.0 - mask_t) * pred


def tactis_sample_pallas(x_feat, tok, noise,
                         w_in, w_qkv, w_o, w_ff1, w_ff2, w_head, pack,
                         *, d_model, d_ff):
    B, Lp, Fp = x_feat.shape
    NSp = noise.shape[1]
    D, Dff = d_model, d_ff

    def batched(shape):        # blocked over batch, batch dim squeezed in-kernel
        return pl.BlockSpec((None,) + shape, lambda b: (b,) + (0,) * len(shape))

    def whole(arr):            # whole (small) parameter array resident in VMEM
        return pl.BlockSpec(arr.shape, lambda b: (0,) * arr.ndim)

    in_specs = [
        batched((Lp, Fp)), batched((TOK_ROWS, Lp)), batched((NSp, Lp)),
        whole(w_in), whole(w_qkv), whole(w_o), whole(w_ff1), whole(w_ff2),
        whole(w_head), whole(pack),
    ]
    out_specs = pl.BlockSpec((None, NSp, Lp), lambda b: (b, 0, 0))

    # Advisory cost estimate for XLA scheduling around the custom call.
    flops = 2 * B * Lp * (Fp * D + 3 * D * D + 2 * Lp * D + D * D
                          + 2 * D * Dff + D * HEAD_ROWS)
    transcendentals = B * (Lp * Lp + 4 * Lp)
    weight_bytes = sum(int(w.size) * w.dtype.itemsize
                       for w in (w_in, w_qkv, w_o, w_ff1, w_ff2, w_head, pack))
    bytes_accessed = (int(x_feat.size) * x_feat.dtype.itemsize
                      + int(tok.size) * 4 + int(noise.size) * 4
                      + B * NSp * Lp * 4 + weight_bytes)

    kernel = functools.partial(tactis_sample_kernel, d_model=D, d_ff=Dff)
    return pl.pallas_call(
        kernel,
        out_shape=jax.ShapeDtypeStruct((B, NSp, Lp), jnp.float32),
        grid_spec=pltpu.PrefetchScalarGridSpec(
            num_scalar_prefetch=0,
            grid=(B,),
            in_specs=in_specs,
            out_specs=out_specs,
        ),
        compiler_params=pltpu.CompilerParams(dimension_semantics=("parallel",)),
        cost_estimate=pl.CostEstimate(flops=flops, transcendentals=transcendentals,
                                      bytes_accessed=bytes_accessed),
    )(x_feat, tok, noise, w_in, w_qkv, w_o, w_ff1, w_ff2, w_head, pack)


# ----------------------------------------------------------------------------
# Parameters
# ----------------------------------------------------------------------------
def init_params(key, feat_dim, d_model, d_ff):
    ks = jax.random.split(key, 6)

    def lin(k, fan_in, shape):
        return jax.random.normal(k, shape, jnp.float32) / jnp.sqrt(jnp.float32(fan_in))

    # head stored transposed: rows = output channels (0 = mu, 1 = sigma), cols = d_model
    w_head = jnp.zeros((HEAD_ROWS, d_model), jnp.float32)
    w_head = w_head.at[:2, :].set(lin(ks[5], d_model, (2, d_model)))

    return dict(
        w_in=lin(ks[0], feat_dim, (feat_dim, d_model)).astype(jnp.bfloat16),
        w_qkv=lin(ks[1], d_model, (d_model, 3 * d_model)).astype(jnp.bfloat16),
        w_o=lin(ks[2], d_model, (d_model, d_model)).astype(jnp.bfloat16),
        w_ff1=lin(ks[3], d_model, (d_model, d_ff)).astype(jnp.bfloat16),
        w_ff2=lin(ks[4], d_ff, (d_ff, d_model)).astype(jnp.bfloat16),
        w_head=w_head.astype(jnp.bfloat16),
        b_in=jnp.zeros((d_model,), jnp.float32),
        g1=jnp.ones((d_model,), jnp.float32),
        be1=jnp.zeros((d_model,), jnp.float32),
        g2=jnp.ones((d_model,), jnp.float32),
        be2=jnp.zeros((d_model,), jnp.float32),
        b1=jnp.zeros((d_ff,), jnp.float32),
        b2=jnp.zeros((d_model,), jnp.float32),
        b_head=jnp.zeros((2,), jnp.float32),
    )


# ----------------------------------------------------------------------------
# Wrapper mirroring TACTiSPredictionNetworkInterpolation.forward
# ----------------------------------------------------------------------------
def _tactis_interpolation_forward(params, past_target_norm, noise_key, *,
                                  prediction_length, history_length,
                                  num_parallel_samples, d_model, d_ff):
    hist_value = jnp.swapaxes(past_target_norm, 1, 2).astype(jnp.float32)    # [B, S, H]
    B, S, H = hist_value.shape
    P = prediction_length
    T = H + P
    NS = num_parallel_samples
    L = S * T
    L_pad = ((L + 127) // 128) * 128
    NS_pad = max(8, ((NS + 7) // 8) * 8)
    off = (history_length - prediction_length) // 2

    # Interpolation semantics: the middle window [off, off+P) of the history is the
    # unobserved target (later sliced out and returned); the appended prediction window
    # [H, H+P) is also unobserved (as in TACTiS.sample).
    t_idx = jnp.arange(T)
    observed = (t_idx < H) & ~((t_idx >= off) & (t_idx < off + P))
    time_mask = observed.astype(jnp.float32)                                 # [T]

    values_full = jnp.concatenate([hist_value, jnp.zeros((B, S, P), jnp.float32)], axis=2)
    mask_full = jnp.broadcast_to(time_mask[None, None, :], (B, S, T))

    # time + series features
    times = jnp.arange(T, dtype=jnp.float32)
    t_norm = (times / T)[:, None]
    freqs = 2.0 ** jnp.arange(4, dtype=jnp.float32)
    ang = times[:, None] * (2.0 * jnp.pi / T) * freqs[None, :]
    time_feat = jnp.concatenate([t_norm, jnp.sin(ang), jnp.cos(ang)], axis=-1)   # [T, 9]
    series_oh = jnp.eye(S, dtype=jnp.float32)

    feat = jnp.concatenate(
        [
            (values_full * mask_full)[..., None],
            mask_full[..., None],
            jnp.broadcast_to(time_feat[None, None], (B, S, T, time_feat.shape[-1])),
            jnp.broadcast_to(series_oh[None, :, None, :], (B, S, T, S)),
        ],
        axis=-1,
    )                                                                        # [B, S, T, F]
    F = feat.shape[-1]
    F_pad = params["w_in"].shape[0]

    # pad tokens: zero features, mask=1 (copy-through of value 0), never returned
    x_feat = jnp.pad(feat.reshape(B, L, F),
                     ((0, 0), (0, L_pad - L), (0, F_pad - F))).astype(jnp.bfloat16)

    # per-batch token block (rows along sublanes, tokens along lanes)
    val_row = jnp.pad(values_full.reshape(B, L), ((0, 0), (0, L_pad - L)))
    mask_row = jnp.pad(mask_full.reshape(B, L), ((0, 0), (0, L_pad - L)),
                       constant_values=1.0)
    tok = jnp.zeros((B, TOK_ROWS, L_pad), jnp.float32)
    tok = tok.at[:, TOK_ROW_VALUE, :].set(val_row)
    tok = tok.at[:, TOK_ROW_MASK, :].set(mask_row)

    # sampling noise, already in output layout [B, NS_pad, L_pad]
    noise = jax.random.normal(noise_key, (B, NS_pad, L_pad), jnp.float32)

    # packed bias / gain / validity block: one shared (16, L_pad) f32 array
    def pack_row(vec):
        return jnp.zeros((L_pad,), jnp.float32).at[:vec.shape[0]].set(vec)

    valid = (jnp.arange(L_pad) < L).astype(jnp.float32)
    rows = {
        ROW_B_IN: pack_row(params["b_in"]),
        ROW_G1: pack_row(params["g1"]),
        ROW_BE1: pack_row(params["be1"]),
        ROW_G2: pack_row(params["g2"]),
        ROW_BE2: pack_row(params["be2"]),
        ROW_B1: pack_row(params["b1"]),
        ROW_B2: pack_row(params["b2"]),
        ROW_VALID: valid,
        ROW_MU_B: jnp.full((L_pad,), params["b_head"][0], jnp.float32),
        ROW_SG_B: jnp.full((L_pad,), params["b_head"][1], jnp.float32),
    }
    pack = jnp.stack([rows.get(r, jnp.zeros((L_pad,), jnp.float32))
                      for r in range(PACK_ROWS)], axis=0)

    flat = tactis_sample_pallas(
        x_feat, tok, noise,
        params["w_in"], params["w_qkv"], params["w_o"],
        params["w_ff1"], params["w_ff2"], params["w_head"], pack,
        d_model=d_model, d_ff=d_ff)                                          # [B, NS_pad, L_pad]

    samples = flat[:, :NS, :L].reshape(B, NS, S, T)                          # [B, NS, S, T]
    sliced = samples[:, :, :, off:off + P]                                   # [B, NS, S, P]
    return jnp.transpose(sliced, (0, 1, 3, 2))                               # [B, NS, P, S]


class TACTiSPredictionNetworkInterpolationPallas:
    """Pallas/TPU port of TACTiSPredictionNetworkInterpolation.forward."""

    def __init__(self, num_series, prediction_length, history_length,
                 num_parallel_samples, d_model=32, d_ff=64, seed=0):
        self.num_series = num_series
        self.prediction_length = prediction_length
        self.history_length = history_length
        self.num_parallel_samples = num_parallel_samples
        self.d_model = d_model
        self.d_ff = d_ff

        key = jax.random.PRNGKey(seed)
        param_key, self.noise_key = jax.random.split(key)
        feat_dim = 1 + 1 + 9 + num_series       # value*mask, mask, time feats, one-hot
        feat_dim_pad = ((feat_dim + 7) // 8) * 8
        self.params = init_params(param_key, feat_dim_pad, d_model, d_ff)

        self._forward = jax.jit(functools.partial(
            _tactis_interpolation_forward,
            prediction_length=prediction_length,
            history_length=history_length,
            num_parallel_samples=num_parallel_samples,
            d_model=d_model, d_ff=d_ff))

    def __call__(self, past_target_norm):
        # fresh noise key per call -> independent samples across calls
        self.noise_key, sub = jax.random.split(self.noise_key)
        return self._forward(self.params, past_target_norm, sub)


# ----------------------------------------------------------------------------
if __name__ == "__main__":
    B, S, HIST, PRED, NSAMP = 2, 4, 16, 8, 8

    net = TACTiSPredictionNetworkInterpolationPallas(
        num_series=S,
        prediction_length=PRED,
        history_length=HIST,
        num_parallel_samples=NSAMP,
        d_model=32,
        d_ff=64,
        seed=0,
    )

    data_key = jax.random.fold_in(jax.random.PRNGKey(0), 123)
    past_target_norm = jax.random.normal(data_key, (B, HIST, S), jnp.float32)

    out = net(past_target_norm)
    out = jax.block_until_ready(out)
    assert out.shape == (B, NSAMP, PRED, S), out.shape
    assert jnp.all(jnp.isfinite(out))
    print("KERNEL_OK")
</pallas_src>

<mosaic_0001>
module attributes {stable_mosaic.version = 11 : i64} {
  func.func @tactis_sample_kernel(%arg0: i32, %arg1: memref<1x128x16xbf16, #tpu.memory_space<vmem>>, %arg2: memref<1x8x128xf32, #tpu.memory_space<vmem>>, %arg3: memref<1x8x128xf32, #tpu.memory_space<vmem>>, %arg4: memref<16x32xbf16, #tpu.memory_space<vmem>>, %arg5: memref<32x96xbf16, #tpu.memory_space<vmem>>, %arg6: memref<32x32xbf16, #tpu.memory_space<vmem>>, %arg7: memref<32x64xbf16, #tpu.memory_space<vmem>>, %arg8: memref<64x32xbf16, #tpu.memory_space<vmem>>, %arg9: memref<8x32xbf16, #tpu.memory_space<vmem>>, %arg10: memref<16x128xf32, #tpu.memory_space<vmem>>, %arg11: memref<1x8x128xf32, #tpu.memory_space<vmem>>) attributes {dimension_semantics = [#tpu.dimension_semantics<parallel>], iteration_bounds = array<i64: 2>, scalar_prefetch = 0 : i64, scratch_operands = 0 : i64, tpu.core_type = #tpu.core_type<tc>, window_params = [{transform_indices = @transform_0, window_bounds = array<i64: 1, 128, 16>}, {transform_indices = @transform_1, window_bounds = array<i64: 1, 8, 128>}, {transform_indices = @transform_2, window_bounds = array<i64: 1, 8, 128>}, {pipeline_mode = #tpu.pipeline_mode<synchronous>, transform_indices = @transform_3, window_bounds = array<i64: 16, 32>}, {pipeline_mode = #tpu.pipeline_mode<synchronous>, transform_indices = @transform_4, window_bounds = array<i64: 32, 96>}, {pipeline_mode = #tpu.pipeline_mode<synchronous>, transform_indices = @transform_5, window_bounds = array<i64: 32, 32>}, {pipeline_mode = #tpu.pipeline_mode<synchronous>, transform_indices = @transform_6, window_bounds = array<i64: 32, 64>}, {pipeline_mode = #tpu.pipeline_mode<synchronous>, transform_indices = @transform_7, window_bounds = array<i64: 64, 32>}, {pipeline_mode = #tpu.pipeline_mode<synchronous>, transform_indices = @transform_8, window_bounds = array<i64: 8, 32>}, {pipeline_mode = #tpu.pipeline_mode<synchronous>, transform_indices = @transform_9, window_bounds = array<i64: 16, 128>}, {transform_indices = @transform_10, window_bounds = array<i64: 1, 8, 128>}]} {
    %c0 = arith.constant 0 : index
    %c0_0 = arith.constant 0 : index
    %0 = vector.load %arg10[%c0, %c0_0] : memref<16x128xf32, #tpu.memory_space<vmem>>, vector<16x128xf32>
    %1 = vector.extract_strided_slice %0 {offsets = [0, 0], sizes = [1, 32], strides = [1, 1]} : vector<16x128xf32> to vector<1x32xf32>
    %2 = vector.extract_strided_slice %0 {offsets = [1, 0], sizes = [1, 32], strides = [1, 1]} : vector<16x128xf32> to vector<1x32xf32>
    %3 = vector.extract_strided_slice %0 {offsets = [2, 0], sizes = [1, 32], strides = [1, 1]} : vector<16x128xf32> to vector<1x32xf32>
    %4 = vector.extract_strided_slice %0 {offsets = [3, 0], sizes = [1, 32], strides = [1, 1]} : vector<16x128xf32> to vector<1x32xf32>
    %5 = vector.extract_strided_slice %0 {offsets = [4, 0], sizes = [1, 32], strides = [1, 1]} : vector<16x128xf32> to vector<1x32xf32>
    %6 = vector.extract_strided_slice %0 {offsets = [5, 0], sizes = [1, 64], strides = [1, 1]} : vector<16x128xf32> to vector<1x64xf32>
    %7 = vector.extract_strided_slice %0 {offsets = [6, 0], sizes = [1, 32], strides = [1, 1]} : vector<16x128xf32> to vector<1x32xf32>
    %8 = vector.extract_strided_slice %0 {offsets = [7, 0], sizes = [1, 128], strides = [1, 1]} : vector<16x128xf32> to vector<1x128xf32>
    %9 = vector.extract_strided_slice %0 {offsets = [8, 0], sizes = [1, 128], strides = [1, 1]} : vector<16x128xf32> to vector<1x128xf32>
    %10 = vector.extract_strided_slice %0 {offsets = [9, 0], sizes = [1, 128], strides = [1, 1]} : vector<16x128xf32> to vector<1x128xf32>
    %c0_1 = arith.constant 0 : index
    %c0_2 = arith.constant 0 : index
    %c0_3 = arith.constant 0 : index
    %11 = vector.load %arg1[%c0_1, %c0_2, %c0_3] : memref<1x128x16xbf16, #tpu.memory_space<vmem>>, vector<1x128x16xbf16>
    %12 = vector.shape_cast %11 : vector<1x128x16xbf16> to vector<128x16xbf16>
    %c0_4 = arith.constant 0 : index
    %c0_5 = arith.constant 0 : index
    %13 = vector.load %arg4[%c0_4, %c0_5] : memref<16x32xbf16, #tpu.memory_space<vmem>>, vector<16x32xbf16>
    %cst = arith.constant dense<0.000000e+00> : vector<128x32xf32>
    %14 = tpu.matmul %12, %13, %cst {dimension_numbers = #tpu.dot_dimension_numbers<[1], [0], [0], [1], [0, 0, 1, 1], [], []>} : vector<128x16xbf16>, vector<16x32xbf16>, vector<128x32xf32> -> vector<128x32xf32>
    %15 = vector.broadcast %1 : vector<1x32xf32> to vector<128x32xf32>
    %16 = arith.addf %14, %15 : vector<128x32xf32>
    %cst_6 = arith.constant dense<0.000000e+00> : vector<128xf32>
    %17 = vector.multi_reduction <add>, %16, %cst_6 [1] : vector<128x32xf32> to vector<128xf32>
    %18 = vector.shape_cast %17 : vector<128xf32> to vector<128x1xf32>
    %cst_7 = arith.constant 3.200000e+01 : f32
    %19 = vector.broadcast %cst_7 : f32 to vector<128x1xf32>
    %20 = arith.divf %18, %19 : vector<128x1xf32>
    %21 = vector.broadcast %20 : vector<128x1xf32> to vector<128x32xf32>
    %22 = arith.subf %16, %21 : vector<128x32xf32>
    %23 = arith.mulf %22, %22 : vector<128x32xf32>
    %cst_8 = arith.constant dense<0.000000e+00> : vector<128xf32>
    %24 = vector.multi_reduction <add>, %23, %cst_8 [1] : vector<128x32xf32> to vector<128xf32>
    %25 = vector.shape_cast %24 : vector<128xf32> to vector<128x1xf32>
    %cst_9 = arith.constant 3.200000e+01 : f32
    %26 = vector.broadcast %cst_9 : f32 to vector<128x1xf32>
    %27 = arith.divf %25, %26 : vector<128x1xf32>
    %28 = vector.broadcast %20 : vector<128x1xf32> to vector<128x32xf32>
    %29 = arith.subf %16, %28 : vector<128x32xf32>
    %cst_10 = arith.constant 9.99999974E-6 : f32
    %30 = vector.broadcast %cst_10 : f32 to vector<128x1xf32>
    %31 = arith.addf %27, %30 : vector<128x1xf32>
    %32 = math.rsqrt %31 : vector<128x1xf32>
    %33 = vector.broadcast %32 : vector<128x1xf32> to vector<128x32xf32>
    %34 = arith.mulf %29, %33 : vector<128x32xf32>
    %35 = vector.broadcast %2 : vector<1x32xf32> to vector<128x32xf32>
    %36 = arith.mulf %34, %35 : vector<128x32xf32>
    %37 = vector.broadcast %3 : vector<1x32xf32> to vector<128x32xf32>
    %38 = arith.addf %36, %37 : vector<128x32xf32>
    %39 = arith.truncf %38 : vector<128x32xf32> to vector<128x32xbf16>
    %c0_11 = arith.constant 0 : index
    %c0_12 = arith.constant 0 : index
    %40 = vector.load %arg5[%c0_11, %c0_12] : memref<32x96xbf16, #tpu.memory_space<vmem>>, vector<32x96xbf16>
    %cst_13 = arith.constant dense<0.000000e+00> : vector<128x96xf32>
    %41 = tpu.matmul %39, %40, %cst_13 {dimension_numbers = #tpu.dot_dimension_numbers<[1], [0], [0], [1], [0, 0, 1, 1], [], []>} : vector<128x32xbf16>, vector<32x96xbf16>, vector<128x96xf32> -> vector<128x96xf32>
    %42 = vector.extract_strided_slice %41 {offsets = [0, 0], sizes = [128, 32], strides = [1, 1]} : vector<128x96xf32> to vector<128x32xf32>
    %43 = vector.extract_strided_slice %41 {offsets = [0, 32], sizes = [128, 32], strides = [1, 1]} : vector<128x96xf32> to vector<128x32xf32>
    %44 = vector.extract_strided_slice %41 {offsets = [0, 64], sizes = [128, 32], strides = [1, 1]} : vector<128x96xf32> to vector<128x32xf32>
    %45 = arith.truncf %42 : vector<128x32xf32> to vector<128x32xbf16>
    %46 = arith.truncf %43 : vector<128x32xf32> to vector<128x32xbf16>
    %cst_14 = arith.constant dense<0.000000e+00> : vector<128x128xf32>
    %47 = tpu.matmul %45, %46, %cst_14 {dimension_numbers = #tpu.dot_dimension_numbers<[1], [1], [0], [0], [0, 0, 1, 0], [], []>} : vector<128x32xbf16>, vector<128x32xbf16>, vector<128x128xf32> -> vector<128x128xf32>
    %cst_15 = arith.constant 0.176776692 : f32
    %48 = vector.broadcast %cst_15 : f32 to vector<128x128xf32>
    %49 = arith.mulf %47, %48 : vector<128x128xf32>
    %cst_16 = arith.constant 1.000000e+00 : f32
    %50 = vector.broadcast %cst_16 : f32 to vector<1x128xf32>
    %51 = arith.subf %8, %50 : vector<1x128xf32>
    %cst_17 = arith.constant 1.000000e+30 : f32
    %52 = vector.broadcast %cst_17 : f32 to vector<1x128xf32>
    %53 = arith.mulf %51, %52 : vector<1x128xf32>
    %54 = vector.broadcast %53 : vector<1x128xf32> to vector<128x128xf32>
    %55 = arith.addf %49, %54 : vector<128x128xf32>
    %cst_18 = arith.constant dense<0xFF800000> : vector<128xf32>
    %56 = vector.multi_reduction <maximumf>, %55, %cst_18 [1] : vector<128x128xf32> to vector<128xf32>
    %57 = vector.shape_cast %56 : vector<128xf32> to vector<128x1xf32>
    %58 = vector.broadcast %57 : vector<128x1xf32> to vector<128x128xf32>
    %59 = arith.subf %55, %58 : vector<128x128xf32>
    %60 = math.exp %59 : vector<128x128xf32>
    %cst_19 = arith.constant dense<0.000000e+00> : vector<128xf32>
    %61 = vector.multi_reduction <add>, %60, %cst_19 [1] : vector<128x128xf32> to vector<128xf32>
    %62 = vector.shape_cast %61 : vector<128xf32> to vector<128x1xf32>
    %63 = tpu.reciprocal %62 {approx = true} : vector<128x1xf32> -> vector<128x1xf32>
    %64 = vector.broadcast %63 : vector<128x1xf32> to vector<128x128xf32>
    %65 = arith.mulf %60, %64 : vector<128x128xf32>
    %66 = arith.truncf %65 : vector<128x128xf32> to vector<128x128xbf16>
    %67 = arith.truncf %44 : vector<128x32xf32> to vector<128x32xbf16>
    %cst_20 = arith.constant dense<0.000000e+00> : vector<128x32xf32>
    %68 = tpu.matmul %66, %67, %cst_20 {dimension_numbers = #tpu.dot_dimension_numbers<[1], [0], [0], [1], [0, 0, 1, 1], [], []>} : vector<128x128xbf16>, vector<128x32xbf16>, vector<128x32xf32> -> vector<128x32xf32>
    %69 = arith.truncf %68 : vector<128x32xf32> to vector<128x32xbf16>
    %c0_21 = arith.constant 0 : index
    %c0_22 = arith.constant 0 : index
    %70 = vector.load %arg6[%c0_21, %c0_22] : memref<32x32xbf16, #tpu.memory_space<vmem>>, vector<32x32xbf16>
    %cst_23 = arith.constant dense<0.000000e+00> : vector<128x32xf32>
    %71 = tpu.matmul %69, %70, %cst_23 {dimension_numbers = #tpu.dot_dimension_numbers<[1], [0], [0], [1], [0, 0, 1, 1], [], []>} : vector<128x32xbf16>, vector<32x32xbf16>, vector<128x32xf32> -> vector<128x32xf32>
    %72 = arith.addf %16, %71 : vector<128x32xf32>
    %cst_24 = arith.constant dense<0.000000e+00> : vector<128xf32>
    %73 = vector.multi_reduction <add>, %72, %cst_24 [1] : vector<128x32xf32> to vector<128xf32>
    %74 = vector.shape_cast %73 : vector<128xf32> to vector<128x1xf32>
    %cst_25 = arith.constant 3.200000e+01 : f32
    %75 = vector.broadcast %cst_25 : f32 to vector<128x1xf32>
    %76 = arith.divf %74, %75 : vector<128x1xf32>
    %77 = vector.broadcast %76 : vector<128x1xf32> to vector<128x32xf32>
    %78 = arith.subf %72, %77 : vector<128x32xf32>
    %79 = arith.mulf %78, %78 : vector<128x32xf32>
    %cst_26 = arith.constant dense<0.000000e+00> : vector<128xf32>
    %80 = vector.multi_reduction <add>, %79, %cst_26 [1] : vector<128x32xf32> to vector<128xf32>
    %81 = vector.shape_cast %80 : vector<128xf32> to vector<128x1xf32>
    %cst_27 = arith.constant 3.200000e+01 : f32
    %82 = vector.broadcast %cst_27 : f32 to vector<128x1xf32>
    %83 = arith.divf %81, %82 : vector<128x1xf32>
    %84 = vector.broadcast %76 : vector<128x1xf32> to vector<128x32xf32>
    %85 = arith.subf %72, %84 : vector<128x32xf32>
    %cst_28 = arith.constant 9.99999974E-6 : f32
    %86 = vector.broadcast %cst_28 : f32 to vector<128x1xf32>
    %87 = arith.addf %83, %86 : vector<128x1xf32>
    %88 = math.rsqrt %87 : vector<128x1xf32>
    %89 = vector.broadcast %88 : vector<128x1xf32> to vector<128x32xf32>
    %90 = arith.mulf %85, %89 : vector<128x32xf32>
    %91 = vector.broadcast %4 : vector<1x32xf32> to vector<128x32xf32>
    %92 = arith.mulf %90, %91 : vector<128x32xf32>
    %93 = vector.broadcast %5 : vector<1x32xf32> to vector<128x32xf32>
    %94 = arith.addf %92, %93 : vector<128x32xf32>
    %95 = arith.truncf %94 : vector<128x32xf32> to vector<128x32xbf16>
    %c0_29 = arith.constant 0 : index
    %c0_30 = arith.constant 0 : index
    %96 = vector.load %arg7[%c0_29, %c0_30] : memref<32x64xbf16, #tpu.memory_space<vmem>>, vector<32x64xbf16>
    %cst_31 = arith.constant dense<0.000000e+00> : vector<128x64xf32>
    %97 = tpu.matmul %95, %96, %cst_31 {dimension_numbers = #tpu.dot_dimension_numbers<[1], [0], [0], [1], [0, 0, 1, 1], [], []>} : vector<128x32xbf16>, vector<32x64xbf16>, vector<128x64xf32> -> vector<128x64xf32>
    %98 = vector.broadcast %6 : vector<1x64xf32> to vector<128x64xf32>
    %99 = arith.addf %97, %98 : vector<128x64xf32>
    %cst_32 = arith.constant 0.000000e+00 : f32
    %100 = vector.broadcast %cst_32 : f32 to vector<128x64xf32>
    %101 = arith.maximumf %99, %100 : vector<128x64xf32>
    %102 = arith.truncf %101 : vector<128x64xf32> to vector<128x64xbf16>
    %c0_33 = arith.constant 0 : index
    %c0_34 = arith.constant 0 : index
    %103 = vector.load %arg8[%c0_33, %c0_34] : memref<64x32xbf16, #tpu.memory_space<vmem>>, vector<64x32xbf16>
    %cst_35 = arith.constant dense<0.000000e+00> : vector<128x32xf32>
    %104 = tpu.matmul %102, %103, %cst_35 {dimension_numbers = #tpu.dot_dimension_numbers<[1], [0], [0], [1], [0, 0, 1, 1], [], []>} : vector<128x64xbf16>, vector<64x32xbf16>, vector<128x32xf32> -> vector<128x32xf32>
    %105 = arith.addf %72, %104 : vector<128x32xf32>
    %106 = vector.broadcast %7 : vector<1x32xf32> to vector<128x32xf32>
    %107 = arith.addf %105, %106 : vector<128x32xf32>
    %c0_36 = arith.constant 0 : index
    %c0_37 = arith.constant 0 : index
    %108 = vector.load %arg9[%c0_36, %c0_37] : memref<8x32xbf16, #tpu.memory_space<vmem>>, vector<8x32xbf16>
    %109 = arith.truncf %107 : vector<128x32xf32> to vector<128x32xbf16>
    %cst_38 = arith.constant dense<0.000000e+00> : vector<8x128xf32>
    %110 = tpu.matmul %108, %109, %cst_38 {dimension_numbers = #tpu.dot_dimension_numbers<[1], [1], [0], [0], [0, 0, 1, 0], [], []>} : vector<8x32xbf16>, vector<128x32xbf16>, vector<8x128xf32> -> vector<8x128xf32>
    %111 = vector.extract_strided_slice %110 {offsets = [0, 0], sizes = [1, 128], strides = [1, 1]} : vector<8x128xf32> to vector<1x128xf32>
    %112 = arith.addf %111, %9 : vector<1x128xf32>
    %113 = vector.extract_strided_slice %110 {offsets = [1, 0], sizes = [1, 128], strides = [1, 1]} : vector<8x128xf32> to vector<1x128xf32>
    %114 = arith.addf %113, %10 : vector<1x128xf32>
    %cst_39 = arith.constant 0.000000e+00 : f32
    %115 = vector.broadcast %cst_39 : f32 to vector<1x128xf32>
    %116 = arith.maximumf %114, %115 : vector<1x128xf32>
    %117 = math.absf %114 : vector<1x128xf32>
    %cst_40 = arith.constant 0.000000e+00 : f32
    %118 = vector.broadcast %cst_40 : f32 to vector<1x128xf32>
    %119 = arith.subf %118, %117 : vector<1x128xf32>
    %120 = math.exp %119 : vector<1x128xf32>
    %121 = math.log1p %120 : vector<1x128xf32>
    %122 = arith.addf %116, %121 : vector<1x128xf32>
    %cst_41 = arith.constant 1.000000e-03 : f32
    %123 = vector.broadcast %cst_41 : f32 to vector<1x128xf32>
    %124 = arith.addf %122, %123 : vector<1x128xf32>
    %c0_42 = arith.constant 0 : index
    %c0_43 = arith.constant 0 : index
    %c0_44 = arith.constant 0 : index
    %125 = vector.load %arg2[%c0_42, %c0_43, %c0_44] : memref<1x8x128xf32, #tpu.memory_space<vmem>>, vector<1x1x128xf32>
    %126 = vector.shape_cast %125 : vector<1x1x128xf32> to vector<1x128xf32>
    %c0_45 = arith.constant 0 : index
    %c1 = arith.constant 1 : index
    %c0_46 = arith.constant 0 : index
    %127 = vector.load %arg2[%c0_45, %c1, %c0_46] : memref<1x8x128xf32, #tpu.memory_space<vmem>>, vector<1x1x128xf32>
    %128 = vector.shape_cast %127 : vector<1x1x128xf32> to vector<1x128xf32>
    %c0_47 = arith.constant 0 : index
    %c0_48 = arith.constant 0 : index
    %c0_49 = arith.constant 0 : index
    %129 = vector.load %arg3[%c0_47, %c0_48, %c0_49] : memref<1x8x128xf32, #tpu.memory_space<vmem>>, vector<1x8x128xf32>
    %130 = vector.shape_cast %129 : vector<1x8x128xf32> to vector<8x128xf32>
    %131 = vector.broadcast %124 : vector<1x128xf32> to vector<8x128xf32>
    %132 = arith.mulf %131, %130 : vector<8x128xf32>
    %133 = vector.broadcast %112 : vector<1x128xf32> to vector<8x128xf32>
    %134 = arith.addf %133, %132 : vector<8x128xf32>
    %135 = arith.mulf %128, %126 : vector<1x128xf32>
    %cst_50 = arith.constant 1.000000e+00 : f32
    %136 = vector.broadcast %cst_50 : f32 to vector<1x128xf32>
    %137 = arith.subf %136, %128 : vector<1x128xf32>
    %138 = vector.broadcast %137 : vector<1x128xf32> to vector<8x128xf32>
    %139 = arith.mulf %138, %134 : vector<8x128xf32>
    %140 = vector.broadcast %135 : vector<1x128xf32> to vector<8x128xf32>
    %141 = arith.addf %140, %139 : vector<8x128xf32>
    %c0_51 = arith.constant 0 : index
    %c0_52 = arith.constant 0 : index
    %c0_53 = arith.constant 0 : index
    %142 = vector.load %arg11[%c0_51, %c0_52, %c0_53] : memref<1x8x128xf32, #tpu.memory_space<vmem>>, vector<1x8x128xf32>
    %143 = vector.shape_cast %142 : vector<1x8x128xf32> to vector<8x128xf32>
    %144 = vector.shape_cast %141 : vector<8x128xf32> to vector<1x8x128xf32>
    tpu.vector_store %arg11[%c0_51, %c0_52, %c0_53], %144 {strides = array<i32>} : memref<1x8x128xf32, #tpu.memory_space<vmem>>, vector<1x8x128xf32>,
    return
  }
  func.func @transform_0(%arg0: i32) -> (i32, i32, i32) {
    %c0_i32 = arith.constant 0 : i32
    %c0_i32_0 = arith.constant 0 : i32
    %c0_i32_1 = arith.constant 0 : i32
    return %arg0, %c0_i32, %c0_i32_0 : i32, i32, i32
  }
  func.func @transform_1(%arg0: i32) -> (i32, i32, i32) {
    %c0_i32 = arith.constant 0 : i32
    %c0_i32_0 = arith.constant 0 : i32
    %c0_i32_1 = arith.constant 0 : i32
    return %arg0, %c0_i32, %c0_i32_0 : i32, i32, i32
  }
  func.func @transform_2(%arg0: i32) -> (i32, i32, i32) {
    %c0_i32 = arith.constant 0 : i32
    %c0_i32_0 = arith.constant 0 : i32
    %c0_i32_1 = arith.constant 0 : i32
    return %arg0, %c0_i32, %c0_i32_0 : i32, i32, i32
  }
  func.func @transform_3(%arg0: i32) -> (i32, i32) {
    %c0_i32 = arith.constant 0 : i32
    %c0_i32_0 = arith.constant 0 : i32
    %c0_i32_1 = arith.constant 0 : i32
    return %c0_i32, %c0_i32_0 : i32, i32
  }
  func.func @transform_4(%arg0: i32) -> (i32, i32) {
    %c0_i32 = arith.constant 0 : i32
    %c0_i32_0 = arith.constant 0 : i32
    %c0_i32_1 = arith.constant 0 : i32
    return %c0_i32, %c0_i32_0 : i32, i32
  }
  func.func @transform_5(%arg0: i32) -> (i32, i32) {
    %c0_i32 = arith.constant 0 : i32
    %c0_i32_0 = arith.constant 0 : i32
    %c0_i32_1 = arith.constant 0 : i32
    return %c0_i32, %c0_i32_0 : i32, i32
  }
  func.func @transform_6(%arg0: i32) -> (i32, i32) {
    %c0_i32 = arith.constant 0 : i32
    %c0_i32_0 = arith.constant 0 : i32
    %c0_i32_1 = arith.constant 0 : i32
    return %c0_i32, %c0_i32_0 : i32, i32
  }
  func.func @transform_7(%arg0: i32) -> (i32, i32) {
    %c0_i32 = arith.constant 0 : i32
    %c0_i32_0 = arith.constant 0 : i32
    %c0_i32_1 = arith.constant 0 : i32
    return %c0_i32, %c0_i32_0 : i32, i32
  }
  func.func @transform_8(%arg0: i32) -> (i32, i32) {
    %c0_i32 = arith.constant 0 : i32
    %c0_i32_0 = arith.constant 0 : i32
    %c0_i32_1 = arith.constant 0 : i32
    return %c0_i32, %c0_i32_0 : i32, i32
  }
  func.func @transform_9(%arg0: i32) -> (i32, i32) {
    %c0_i32 = arith.constant 0 : i32
    %c0_i32_0 = arith.constant 0 : i32
    %c0_i32_1 = arith.constant 0 : i32
    return %c0_i32, %c0_i32_0 : i32, i32
  }
  func.func @transform_10(%arg0: i32) -> (i32, i32, i32) {
    %c0_i32 = arith.constant 0 : i32
    %c0_i32_0 = arith.constant 0 : i32
    %c0_i32_1 = arith.constant 0 : i32
    return %arg0, %c0_i32, %c0_i32_0 : i32, i32, i32
  }
}

</mosaic_0001>

<llo_original>
// kernel: _tactis_interpolation_forward.1
$region0: #{_tactis_interpolation_forward.1}
  #allocation0 [shape = 'u32[]', space=smem, size = 0x4, offset = 0x4, fixed_abs, tag = 'smem constant byte address 0x4 - core index']
  #allocation1 [shape = 'u32[72,128]{1,0:T(1,128)}', space=vmem, size = 0x9000, scoped, tag = 'internal scratch']
  %s0 = inlined_call_operand.vmem [shape: bf16[2,128,16], index: 0, kind: input, shape index: {}]
  %s1 = inlined_call_operand.vmem [shape: f32[2,8,128], index: 1, kind: input, shape index: {}]
  %s2 = inlined_call_operand.vmem [shape: f32[2,8,128], index: 2, kind: input, shape index: {}]
  %s3 = inlined_call_operand.vmem [shape: bf16[16,32], index: 3, kind: input, shape index: {}]
  %s4 = inlined_call_operand.vmem [shape: bf16[32,96], index: 4, kind: input, shape index: {}]
  %s5 = inlined_call_operand.vmem [shape: bf16[32,32], index: 5, kind: input, shape index: {}]
  %s6 = inlined_call_operand.vmem [shape: bf16[32,64], index: 6, kind: input, shape index: {}]
  %s7 = inlined_call_operand.vmem [shape: bf16[64,32], index: 7, kind: input, shape index: {}]
  %s8 = inlined_call_operand.vmem [shape: bf16[8,32], index: 8, kind: input, shape index: {}]
  %s9 = inlined_call_operand.vmem [shape: f32[16,128], index: 9, kind: input, shape index: {}]
  %s10 = inlined_call_operand.vmem [shape: f32[2,8,128], index: 10, kind: output, shape index: {}]
  %s11 = sld [smem:[#allocation0]]
  $region73: #{_tactis_interpolation_forward.1} parent=0
    _
  %s13 = ssub.s32 1, %s11
  %s14 = scalar_select 0, %s13, %s11
  loop: start=0, step=1, limit=4
  $region2: #{_tactis_interpolation_forward.1} parent=0 // loop_pre_header
    _
  $region3: #{_tactis_interpolation_forward.1} parent=0 // loop_header
    %s16 = sphi 0, %s20
    %p17 = scmp.ge.s32.totalorder %s16, 4
    %s26 = sphi 0, %s28
    %s29 = sphi 0, %s26
    %s30 = sphi 0, %s29
    %s46 = sphi 0, %s30
    %s52 = sphi 0, %s54
    %s55 = sphi 0, %s52
    %s56 = sphi 0, %s55
    %s72 = sphi 0, %s56
    %s78 = sphi 0, %s80
    %s81 = sphi 0, %s78
    %s82 = sphi 0, %s81
    %s98 = sphi 0, %s82
    %s102 = sphi 0, %s102
    %s104 = sphi 0, %s102
    %s105 = sphi 0, %s104
    %s119 = sphi 0, %s105
    %s123 = sphi 0, %s123
    %s125 = sphi 0, %s123
    %s126 = sphi 0, %s125
    %s140 = sphi 0, %s126
    %s144 = sphi 0, %s144
    %s146 = sphi 0, %s144
    %s147 = sphi 0, %s146
    %s161 = sphi 0, %s147
    %s165 = sphi 0, %s165
    %s167 = sphi 0, %s165
    %s168 = sphi 0, %s167
    %s182 = sphi 0, %s168
    %s186 = sphi 0, %s186
    %s188 = sphi 0, %s186
    %s189 = sphi 0, %s188
    %s203 = sphi 0, %s189
    %s207 = sphi 0, %s207
    %s209 = sphi 0, %s207
    %s210 = sphi 0, %s209
    %s224 = sphi 0, %s210
    %s228 = sphi 0, %s228
    %s230 = sphi 0, %s228
    %s231 = sphi 0, %s230
    %s245 = sphi 0, %s231
    %s251 = sphi 0, %s253
    %s254 = sphi 0, %s251
    %s255 = sphi 0, %s254
    %s271 = sphi 0, %s255
  $region4: #{_tactis_interpolation_forward.1} parent=0 // loop_header_branch
    %19 = sbr.rel (%p17) target = $region8
  $region5: #{_tactis_interpolation_forward.1} parent=0 // loop_body
    %s21 = ssub.s32 %s16, 1
    %s22 = ssub.s32 %s16, 2
    %s23 = sadd.s32 %s16, 1
    %s24 = ssub.s32 %s16, %s23
    %p25 = scmp.eq.s32.totalorder %s24, 0
    %s27 = sadd.s32 %s26, 1
    %s28 = scalar_select %p25, %s26, %s27
    %p31 = pneg %p25
    %p32 = scmp.eq.s32.totalorder %s16, 1
    %p33 = por %p31, %p32
    %p34 = scmp.ne.s32.totalorder %s26, %s29
    %p35 = scmp.eq.s32.totalorder %s16, 0
    %p36 = por %p34, %p35
    %p37 = scmp.ne.s32.totalorder %s26, %s29
    %p38 = scmp.eq.s32.totalorder %s21, 1
    %p39 = por %p37, %p38
    %p40 = scmp.ne.s32.totalorder %s29, %s30
    %p41 = scmp.eq.s32.totalorder %s21, 0
    %p42 = por %p40, %p41
    %p43 = scmp.ne.s32.totalorder %s29, %s30
    %p44 = scmp.eq.s32.totalorder %s22, 1
    %p45 = por %p43, %p44
    %p47 = scmp.ne.s32.totalorder %s30, %s46
    %p48 = scmp.eq.s32.totalorder %s22, 0
    %p49 = por %p47, %p48
    %s50 = ssub.s32 %s16, %s23
    %p51 = scmp.eq.s32.totalorder %s50, 0
    %s53 = sadd.s32 %s52, 1
    %s54 = scalar_select %p51, %s52, %s53
    %p57 = pneg %p51
    %p58 = scmp.eq.s32.totalorder %s16, 1
    %p59 = por %p57, %p58
    %p60 = scmp.ne.s32.totalorder %s52, %s55
    %p61 = scmp.eq.s32.totalorder %s16, 0
    %p62 = por %p60, %p61
    %p63 = scmp.ne.s32.totalorder %s52, %s55
    %p64 = scmp.eq.s32.totalorder %s21, 1
    %p65 = por %p63, %p64
    %p66 = scmp.ne.s32.totalorder %s55, %s56
    %p67 = scmp.eq.s32.totalorder %s21, 0
    %p68 = por %p66, %p67
    %p69 = scmp.ne.s32.totalorder %s55, %s56
    %p70 = scmp.eq.s32.totalorder %s22, 1
    %p71 = por %p69, %p70
    %p73 = scmp.ne.s32.totalorder %s56, %s72
    %p74 = scmp.eq.s32.totalorder %s22, 0
    %p75 = por %p73, %p74
    %s76 = ssub.s32 %s16, %s23
    %p77 = scmp.eq.s32.totalorder %s76, 0
    %s79 = sadd.s32 %s78, 1
    %s80 = scalar_select %p77, %s78, %s79
    %p83 = pneg %p77
    %p84 = scmp.eq.s32.totalorder %s16, 1
    %p85 = por %p83, %p84
    %p86 = scmp.ne.s32.totalorder %s78, %s81
    %p87 = scmp.eq.s32.totalorder %s16, 0
    %p88 = por %p86, %p87
    %p89 = scmp.ne.s32.totalorder %s78, %s81
    %p90 = scmp.eq.s32.totalorder %s21, 1
    %p91 = por %p89, %p90
    %p92 = scmp.ne.s32.totalorder %s81, %s82
    %p93 = scmp.eq.s32.totalorder %s21, 0
    %p94 = por %p92, %p93
    %p95 = scmp.ne.s32.totalorder %s81, %s82
    %p96 = scmp.eq.s32.totalorder %s22, 1
    %p97 = por %p95, %p96
    %p99 = scmp.ne.s32.totalorder %s82, %s98
    %p100 = scmp.eq.s32.totalorder %s22, 0
    %p101 = por %p99, %p100
    %s103 = sadd.s32 %s102, 1
    %p106 = scmp.eq.s32.totalorder %s16, 1
    %p107 = scmp.ne.s32.totalorder %s102, %s104
    %p108 = scmp.eq.s32.totalorder %s16, 0
    %p109 = por %p107, %p108
    %p110 = scmp.ne.s32.totalorder %s102, %s104
    %p111 = scmp.eq.s32.totalorder %s21, 1
    %p112 = por %p110, %p111
    %p113 = scmp.ne.s32.totalorder %s104, %s105
    %p114 = scmp.eq.s32.totalorder %s21, 0
    %p115 = por %p113, %p114
    %p116 = scmp.ne.s32.totalorder %s104, %s105
    %p117 = scmp.eq.s32.totalorder %s22, 1
    %p118 = por %p116, %p117
    %p120 = scmp.ne.s32.totalorder %s105, %s119
    %p121 = scmp.eq.s32.totalorder %s22, 0
    %p122 = por %p120, %p121
    %s124 = sadd.s32 %s123, 1
    %p127 = scmp.eq.s32.totalorder %s16, 1
    %p128 = scmp.ne.s32.totalorder %s123, %s125
    %p129 = scmp.eq.s32.totalorder %s16, 0
    %p130 = por %p128, %p129
    %p131 = scmp.ne.s32.totalorder %s123, %s125
    %p132 = scmp.eq.s32.totalorder %s21, 1
    %p133 = por %p131, %p132
    %p134 = scmp.ne.s32.totalorder %s125, %s126
    %p135 = scmp.eq.s32.totalorder %s21, 0
    %p136 = por %p134, %p135
    %p137 = scmp.ne.s32.totalorder %s125, %s126
    %p138 = scmp.eq.s32.totalorder %s22, 1
    %p139 = por %p137, %p138
    %p141 = scmp.ne.s32.totalorder %s126, %s140
    %p142 = scmp.eq.s32.totalorder %s22, 0
    %p143 = por %p141, %p142
    %s145 = sadd.s32 %s144, 1
    %p148 = scmp.eq.s32.totalorder %s16, 1
    %p149 = scmp.ne.s32.totalorder %s144, %s146
    %p150 = scmp.eq.s32.totalorder %s16, 0
    %p151 = por %p149, %p150
    %p152 = scmp.ne.s32.totalorder %s144, %s146
    %p153 = scmp.eq.s32.totalorder %s21, 1
    %p154 = por %p152, %p153
    %p155 = scmp.ne.s32.totalorder %s146, %s147
    %p156 = scmp.eq.s32.totalorder %s21, 0
    %p157 = por %p155, %p156
    %p158 = scmp.ne.s32.totalorder %s146, %s147
    %p159 = scmp.eq.s32.totalorder %s22, 1
    %p160 = por %p158, %p159
    %p162 = scmp.ne.s32.totalorder %s147, %s161
    %p163 = scmp.eq.s32.totalorder %s22, 0
    %p164 = por %p162, %p163
    %s166 = sadd.s32 %s165, 1
    %p169 = scmp.eq.s32.totalorder %s16, 1
    %p170 = scmp.ne.s32.totalorder %s165, %s167
    %p171 = scmp.eq.s32.totalorder %s16, 0
    %p172 = por %p170, %p171
    %p173 = scmp.ne.s32.totalorder %s165, %s167
    %p174 = scmp.eq.s32.totalorder %s21, 1
    %p175 = por %p173, %p174
    %p176 = scmp.ne.s32.totalorder %s167, %s168
    %p177 = scmp.eq.s32.totalorder %s21, 0
    %p178 = por %p176, %p177
    %p179 = scmp.ne.s32.totalorder %s167, %s168
    %p180 = scmp.eq.s32.totalorder %s22, 1
    %p181 = por %p179, %p180
    %p183 = scmp.ne.s32.totalorder %s168, %s182
    %p184 = scmp.eq.s32.totalorder %s22, 0
    %p185 = por %p183, %p184
    %s187 = sadd.s32 %s186, 1
    %p190 = scmp.eq.s32.totalorder %s16, 1
    %p191 = scmp.ne.s32.totalorder %s186, %s188
    %p192 = scmp.eq.s32.totalorder %s16, 0
    %p193 = por %p191, %p192
    %p194 = scmp.ne.s32.totalorder %s186, %s188
    %p195 = scmp.eq.s32.totalorder %s21, 1
    %p196 = por %p194, %p195
    %p197 = scmp.ne.s32.totalorder %s188, %s189
    %p198 = scmp.eq.s32.totalorder %s21, 0
    %p199 = por %p197, %p198
    %p200 = scmp.ne.s32.totalorder %s188, %s189
    %p201 = scmp.eq.s32.totalorder %s22, 1
    %p202 = por %p200, %p201
    %p204 = scmp.ne.s32.totalorder %s189, %s203
    %p205 = scmp.eq.s32.totalorder %s22, 0
    %p206 = por %p204, %p205
    %s208 = sadd.s32 %s207, 1
    %p211 = scmp.eq.s32.totalorder %s16, 1
    %p212 = scmp.ne.s32.totalorder %s207, %s209
    %p213 = scmp.eq.s32.totalorder %s16, 0
    %p214 = por %p212, %p213
    %p215 = scmp.ne.s32.totalorder %s207, %s209
    %p216 = scmp.eq.s32.totalorder %s21, 1
    %p217 = por %p215, %p216
    %p218 = scmp.ne.s32.totalorder %s209, %s210
    %p219 = scmp.eq.s32.totalorder %s21, 0
    %p220 = por %p218, %p219
    %p221 = scmp.ne.s32.totalorder %s209, %s210
    %p222 = scmp.eq.s32.totalorder %s22, 1
    %p223 = por %p221, %p222
    %p225 = scmp.ne.s32.totalorder %s210, %s224
    %p226 = scmp.eq.s32.totalorder %s22, 0
    %p227 = por %p225, %p226
    %s229 = sadd.s32 %s228, 1
    %p232 = scmp.eq.s32.totalorder %s16, 1
    %p233 = scmp.ne.s32.totalorder %s228, %s230
    %p234 = scmp.eq.s32.totalorder %s16, 0
    %p235 = por %p233, %p234
    %p236 = scmp.ne.s32.totalorder %s228, %s230
    %p237 = scmp.eq.s32.totalorder %s21, 1
    %p238 = por %p236, %p237
    %p239 = scmp.ne.s32.totalorder %s230, %s231
    %p240 = scmp.eq.s32.totalorder %s21, 0
    %p241 = por %p239, %p240
    %p242 = scmp.ne.s32.totalorder %s230, %s231
    %p243 = scmp.eq.s32.totalorder %s22, 1
    %p244 = por %p242, %p243
    %p246 = scmp.ne.s32.totalorder %s231, %s245
    %p247 = scmp.eq.s32.totalorder %s22, 0
    %p248 = por %p246, %p247
    %s249 = ssub.s32 %s16, %s23
    %p250 = scmp.eq.s32.totalorder %s249, 0
    %s252 = sadd.s32 %s251, 1
    %s253 = scalar_select %p250, %s251, %s252
    %p256 = pneg %p250
    %p257 = scmp.eq.s32.totalorder %s16, 1
    %p258 = por %p256, %p257
    %p259 = scmp.ne.s32.totalorder %s251, %s254
    %p260 = scmp.eq.s32.totalorder %s16, 0
    %p261 = por %p259, %p260
    %p262 = scmp.ne.s32.totalorder %s251, %s254
    %p263 = scmp.eq.s32.totalorder %s21, 1
    %p264 = por %p262, %p263
    %p265 = scmp.ne.s32.totalorder %s254, %s255
    %p266 = scmp.eq.s32.totalorder %s21, 0
    %p267 = por %p265, %p266
    %p268 = scmp.ne.s32.totalorder %s254, %s255
    %p269 = scmp.eq.s32.totalorder %s22, 1
    %p270 = por %p268, %p269
    %p272 = scmp.ne.s32.totalorder %s255, %s271
    %p273 = scmp.eq.s32.totalorder %s22, 0
    %p274 = por %p272, %p273
    %p275 = scmp.le.s32.totalorder 1, %s16
    %p276 = scmp.lt.s32.totalorder %s16, 3
    %p277 = pnand %p275, %p276
    %p278 = pneg %p277
    // Predicated region
    $region9: #{_tactis_interpolation_forward.1} parent=5 // pred_check
      _
    $region10: #{_tactis_interpolation_forward.1} parent=5 // pred_check_branch
      %280 = sbr.rel (%p277) target = $region12
    $region11: #{_tactis_interpolation_forward.1} parent=5 // pred_region
      %s281 = ssub.s32 %s16, 1
      // Predicated region
      $region13: #{_tactis_interpolation_forward.1} parent=11 // pred_check
        %p282 = pneg %p115
      $region14: #{_tactis_interpolation_forward.1} parent=11 // pred_check_branch
        %284 = sbr.rel (%p282) target = $region16
      $region15: #{_tactis_interpolation_forward.1} parent=11 // pred_region
        _
      $region16: #{_tactis_interpolation_forward.1} parent=11 // pred_fallthru
        _
      // Predicated region
      $region17: #{_tactis_interpolation_forward.1} parent=11 // pred_check
        %p285 = pneg %p136
      $region18: #{_tactis_interpolation_forward.1} parent=11 // pred_check_branch
        %287 = sbr.rel (%p285) target = $region20
      $region19: #{_tactis_interpolation_forward.1} parent=11 // pred_region
        _
      $region20: #{_tactis_interpolation_forward.1} parent=11 // pred_fallthru
        _
      // Predicated region
      $region21: #{_tactis_interpolation_forward.1} parent=11 // pred_check
        %p288 = pneg %p157
      $region22: #{_tactis_interpolation_forward.1} parent=11 // pred_check_branch
        %290 = sbr.rel (%p288) target = $region24
      $region23: #{_tactis_interpolation_forward.1} parent=11 // pred_region
        _
      $region24: #{_tactis_interpolation_forward.1} parent=11 // pred_fallthru
        _
      // Predicated region
      $region25: #{_tactis_interpolation_forward.1} parent=11 // pred_check
        %p291 = pneg %p178
      $region26: #{_tactis_interpolation_forward.1} parent=11 // pred_check_branch
        %293 = sbr.rel (%p291) target = $region28
      $region27: #{_tactis_interpolation_forward.1} parent=11 // pred_region
        _
      $region28: #{_tactis_interpolation_forward.1} parent=11 // pred_fallthru
        _
      // Predicated region
      $region29: #{_tactis_interpolation_forward.1} parent=11 // pred_check
        %p294 = pneg %p199
      $region30: #{_tactis_interpolation_forward.1} parent=11 // pred_check_branch
        %296 = sbr.rel (%p294) target = $region32
      $region31: #{_tactis_interpolation_forward.1} parent=11 // pred_region
        _
      $region32: #{_tactis_interpolation_forward.1} parent=11 // pred_fallthru
        _
      // Predicated region
      $region33: #{_tactis_interpolation_forward.1} parent=11 // pred_check
        %p297 = pneg %p220
      $region34: #{_tactis_interpolation_forward.1} parent=11 // pred_check_branch
        %299 = sbr.rel (%p297) target = $region36
      $region35: #{_tactis_interpolation_forward.1} parent=11 // pred_region
        _
      $region36: #{_tactis_interpolation_forward.1} parent=11 // pred_fallthru
        _
      // Predicated region
      $region37: #{_tactis_interpolation_forward.1} parent=11 // pred_check
        %p300 = pneg %p241
      $region38: #{_tactis_interpolation_forward.1} parent=11 // pred_check_branch
        %302 = sbr.rel (%p300) target = $region40
      $region39: #{_tactis_interpolation_forward.1} parent=11 // pred_region
        _
      $region40: #{_tactis_interpolation_forward.1} parent=11 // pred_fallthru
        _
    $region12: #{_tactis_interpolation_forward.1} parent=5 // pred_fallthru
      _
    %p303 = scmp.lt.s32.totalorder %s16, 2
    // Predicated region
    $region41: #{_tactis_interpolation_forward.1} parent=5 // pred_check
      %p304 = pneg %p303
    $region42: #{_tactis_interpolation_forward.1} parent=5 // pred_check_branch
      %306 = sbr.rel (%p304) target = $region44
    $region43: #{_tactis_interpolation_forward.1} parent=5 // pred_region
      // Predicated region
      $region45: #{_tactis_interpolation_forward.1} parent=43 // pred_check
        %p307 = pneg %p36
      $region46: #{_tactis_interpolation_forward.1} parent=43 // pred_check_branch
        %309 = sbr.rel (%p307) target = $region48
      $region47: #{_tactis_interpolation_forward.1} parent=43 // pred_region
        %p310 = scmp.lt.s32.totalorder %s16, 1
        %s311 = scalar_select %p310, %s16, 1
        %s312 = smul.addr %s311, 16
        %s313 = smul.addr %s312, 4
        %s314 = scalar_lea.vmem %s0, %s313
      $region48: #{_tactis_interpolation_forward.1} parent=43 // pred_fallthru
        _
      // Predicated region
      $region49: #{_tactis_interpolation_forward.1} parent=43 // pred_check
        %p315 = pneg %p62
      $region50: #{_tactis_interpolation_forward.1} parent=43 // pred_check_branch
        %317 = sbr.rel (%p315) target = $region52
      $region51: #{_tactis_interpolation_forward.1} parent=43 // pred_region
        %p318 = scmp.lt.s32.totalorder %s16, 1
        %s319 = scalar_select %p318, %s16, 1
        %s320 = smul.addr %s319, 8
        %s321 = scalar_lea.vmem %s1, %s320
      $region52: #{_tactis_interpolation_forward.1} parent=43 // pred_fallthru
        _
      // Predicated region
      $region53: #{_tactis_interpolation_forward.1} parent=43 // pred_check
        %p322 = pneg %p88
      $region54: #{_tactis_interpolation_forward.1} parent=43 // pred_check_branch
        %324 = sbr.rel (%p322) target = $region56
      $region55: #{_tactis_interpolation_forward.1} parent=43 // pred_region
        %p325 = scmp.lt.s32.totalorder %s16, 1
        %s326 = scalar_select %p325, %s16, 1
        %s327 = smul.addr %s326, 8
        %s328 = scalar_lea.vmem %s2, %s327
      $region56: #{_tactis_interpolation_forward.1} parent=43 // pred_fallthru
        _
    $region44: #{_tactis_interpolation_forward.1} parent=5 // pred_fallthru
      _
    %p329 = scmp.le.s32.totalorder 1, %s16
    %p330 = scmp.lt.s32.totalorder %s16, 3
    %p331 = pnand %p329, %p330
    %p332 = pneg %p331
    // Predicated region
    $region57: #{_tactis_interpolation_forward.1} parent=5 // pred_check
      _
    $region58: #{_tactis_interpolation_forward.1} parent=5 // pred_check_branch
      %334 = sbr.rel (%p331) target = $region60
    $region59: #{_tactis_interpolation_forward.1} parent=5 // pred_region
      %s335 = ssub.s32 %s16, 1
      %p336 = scmp.lt.s32.totalorder %s21, 1
      %s337 = scalar_select %p336, %s21, 1
      %s338 = smul.addr %s337, 16
      %s339 = smul.addr %s338, 4
      %s340 = scalar_lea.vmem %s0, %s339
      %p341 = pneg %p42
      %p342 = pneg %p39
      %p343 = scmp.lt.s32.totalorder %s21, 1
      %s344 = scalar_select %p343, %s21, 1
      %s345 = smul.addr %s344, 8
      %s346 = scalar_lea.vmem %s1, %s345
      %p347 = pneg %p68
      %p348 = pneg %p65
      %p349 = scmp.lt.s32.totalorder %s21, 1
      %s350 = scalar_select %p349, %s21, 1
      %s351 = smul.addr %s350, 8
      %s352 = scalar_lea.vmem %s2, %s351
      %p353 = pneg %p94
      %p354 = pneg %p91
      %p355 = pneg %p115
      %p356 = pneg %p112
      %p357 = pneg %p136
      %p358 = pneg %p133
      %p359 = pneg %p157
      %p360 = pneg %p154
      %p361 = pneg %p178
      %p362 = pneg %p175
      %p363 = pneg %p199
      %p364 = pneg %p196
      %p365 = pneg %p220
      %p366 = pneg %p217
      %p367 = pneg %p241
      %p368 = pneg %p238
      %p369 = pneg %p267
      %p370 = pneg %p264
      %p371 = scmp.lt.s32.totalorder %s21, 1
      %s372 = scalar_select %p371, %s21, 1
      %s373 = smul.addr %s372, 8
      %s374 = scalar_lea.vmem %s10, %s373
      %p375 = scmp.lt.s32.totalorder %s21, 1
      %s376 = scalar_select %p375, %s21, 1
      %s377 = smul.addr %s376, 16
      %s378 = smul.addr %s377, 4
      %s379 = scalar_lea.vmem %s0, %s378
      %p380 = scmp.lt.s32.totalorder %s21, 1
      %s381 = scalar_select %p380, %s21, 1
      %s382 = smul.addr %s381, 8
      %s383 = scalar_lea.vmem %s1, %s382
      %p384 = scmp.lt.s32.totalorder %s21, 1
      %s385 = scalar_select %p384, %s21, 1
      %s386 = smul.addr %s385, 8
      %s387 = scalar_lea.vmem %s2, %s386
      %p388 = scmp.lt.s32.totalorder %s21, 1
      %s389 = scalar_select %p388, %s21, 1
      %s390 = smul.addr %s389, 8
      %s391 = scalar_lea.vmem %s10, %s390
      %v393 = vld [vmem:[%s9] sm:$0xff]
      %v394 = vld [vmem:[%s9 + $0x8] sm:$0xff]
      %v395 = vld [vmem:[%s379] sm:$0xf]
      %v396 = vld [vmem:[%s379 + $0x4] sm:$0xf]
      %v397 = vld [vmem:[%s379 + $0x8] sm:$0xf]
      %v398 = vld [vmem:[%s379 + $0xc] sm:$0xf]
      %v399 = vld [vmem:[%s379 + $0x10] sm:$0xf]
      %v400 = vld [vmem:[%s379 + $0x14] sm:$0xf]
      %v401 = vld [vmem:[%s379 + $0x18] sm:$0xf]
      %v402 = vld [vmem:[%s379 + $0x1c] sm:$0xf]
      %v403 = vld [vmem:[%s379 + $0x20] sm:$0xf]
      %v404 = vld [vmem:[%s379 + $0x24] sm:$0xf]
      %v405 = vld [vmem:[%s379 + $0x28] sm:$0xf]
      %v406 = vld [vmem:[%s379 + $0x2c] sm:$0xf]
      %v407 = vld [vmem:[%s379 + $0x30] sm:$0xf]
      %v408 = vld [vmem:[%s379 + $0x34] sm:$0xf]
      %v409 = vld [vmem:[%s379 + $0x38] sm:$0xf]
      %v410 = vld [vmem:[%s379 + $0x3c] sm:$0xf]
      %v411 = vld [vmem:[%s3] sm:$0xf]
      %v412 = vld [vmem:[%s3 + $0x4] sm:$0xf]
      %v413 = vperm.slane %v393, 0
      %v430 = vunpack.c.l.b16 %v395
      %v431 = vunpack.c.l.b16 %v396
      %v432 = vunpack.c.l.b16 %v397
      %v433 = vunpack.c.l.b16 %v398
      %v434 = vunpack.c.l.b16 %v399
      %v435 = vunpack.c.l.b16 %v400
      %v436 = vunpack.c.l.b16 %v401
      %v437 = vunpack.c.l.b16 %v402
      %v438 = vunpack.c.l.b16 %v403
      %v439 = vunpack.c.l.b16 %v404
      %v440 = vunpack.c.l.b16 %v405
      %v441 = vunpack.c.l.b16 %v406
      %v442 = vunpack.c.l.b16 %v407
      %v443 = vunpack.c.l.b16 %v408
      %v444 = vunpack.c.l.b16 %v409
      %v445 = vunpack.c.l.b16 %v410
      %v446 = vpack.c.b16 %v431, %v430
      %v447 = vpack.c.b16 %v433, %v432
      %v448 = vpack.c.b16 %v435, %v434
      %v449 = vpack.c.b16 %v437, %v436
      %v450 = vpack.c.b16 %v439, %v438
      %v451 = vpack.c.b16 %v441, %v440
      %v452 = vpack.c.b16 %v443, %v442
      %v453 = vpack.c.b16 %v445, %v444
      %v456 = vunpack.c.l.b16 %v411
      %v457 = vunpack.c.l.b16 %v412
      %v458 = vpack.c.b16 %v457, %v456
      %vm460 = vcmask 130048
      %v462 = vsel %vm460, %v446, 0
      %v465 = vsel %vm460, %v447, 0
      %v468 = vsel %vm460, %v448, 0
      %v471 = vsel %vm460, %v449, 0
      %v474 = vsel %vm460, %v450, 0
      %v477 = vsel %vm460, %v451, 0
      %v480 = vsel %vm460, %v452, 0
      %v483 = vsel %vm460, %v453, 0
      %485 = vmatpush.bf16.msra.mxu0 0
      %486 = vmatpush.bf16.msra.mxu0 0
      %487 = vmatpush.bf16.msra.mxu0 0
      %488 = vmatpush.bf16.msra.mxu0 0
      %489 = vmatpush.bf16.msra.mxu0 0
      %490 = vmatpush.bf16.msra.mxu0 0
      %491 = vmatpush.bf16.msra.mxu0 0
      %492 = vmatpush.bf16.msra.mxu0 %v458
      %493 = vmatmul.bf16.gmra.mxu0 %v462
      %v494 = vpop.f32.mrf.mxu0
      %v495 = vadd.f32 %v413, %v494
      %v496 = vpop.f32.mrf.mxu0
      %v497 = vadd.f32 %v413, %v496
      %498 = vmatmul.bf16.gmra.mxu0 %v465
      %v499 = vpop.f32.mrf.mxu0
      %v500 = vadd.f32 %v413, %v499
      %v501 = vpop.f32.mrf.mxu0
      %v502 = vadd.f32 %v413, %v501
      %503 = vmatmul.bf16.gmra.mxu0 %v468
      %v504 = vpop.f32.mrf.mxu0
      %v505 = vadd.f32 %v413, %v504
      %v506 = vpop.f32.mrf.mxu0
      %v507 = vadd.f32 %v413, %v506
      %508 = vmatmul.bf16.gmra.mxu0 %v471
      %v509 = vpop.f32.mrf.mxu0
      %v510 = vadd.f32 %v413, %v509
      %v511 = vpop.f32.mrf.mxu0
      %v512 = vadd.f32 %v413, %v511
      %513 = vmatmul.bf16.gmra.mxu0 %v474
      %v514 = vpop.f32.mrf.mxu0
      %v515 = vadd.f32 %v413, %v514
      %v516 = vpop.f32.mrf.mxu0
      %v517 = vadd.f32 %v413, %v516
      %518 = vmatmul.bf16.gmra.mxu0 %v477
      %v519 = vpop.f32.mrf.mxu0
      %v520 = vadd.f32 %v413, %v519
      %v521 = vpop.f32.mrf.mxu0
      %v522 = vadd.f32 %v413, %v521
      %523 = vmatmul.bf16.gmra.mxu0 %v480
      %v524 = vpop.f32.mrf.mxu0
      %v525 = vadd.f32 %v413, %v524
      %v526 = vpop.f32.mrf.mxu0
      %v527 = vadd.f32 %v413, %v526
      %528 = vmatmul.bf16.gmra.mxu0 %v483
      %v529 = vpop.f32.mrf.mxu0
      %v530 = vadd.f32 %v413, %v529
      %v531 = vpop.f32.mrf.mxu0
      %v532 = vadd.f32 %v413, %v531
      %533 = vdwg.mxu0
      %vm534 = vcmask 261120
      %v535 = vsel %vm534, %v495, 0.0
      %536 = vadd.xlane.f32.xlu0 %v535
      %v537 = vpop.xlane.xlu0 %536
      %v538 = vsel %vm534, %v497, 0.0
      %539 = vadd.xlane.f32.xlu0 %v538
      %v540 = vpop.xlane.xlu0 %539
      %v541 = vsel %vm534, %v500, 0.0
      %542 = vadd.xlane.f32.xlu0 %v541
      %v543 = vpop.xlane.xlu0 %542
      %v544 = vsel %vm534, %v502, 0.0
      %545 = vadd.xlane.f32.xlu0 %v544
      %v546 = vpop.xlane.xlu0 %545
      %v547 = vsel %vm534, %v505, 0.0
      %548 = vadd.xlane.f32.xlu0 %v547
      %v549 = vpop.xlane.xlu0 %548
      %v550 = vsel %vm534, %v507, 0.0
      %551 = vadd.xlane.f32.xlu0 %v550
      %v552 = vpop.xlane.xlu0 %551
      %v553 = vsel %vm534, %v510, 0.0
      %554 = vadd.xlane.f32.xlu0 %v553
      %v555 = vpop.xlane.xlu0 %554
      %v556 = vsel %vm534, %v512, 0.0
      %557 = vadd.xlane.f32.xlu0 %v556
      %v558 = vpop.xlane.xlu0 %557
      %v559 = vsel %vm534, %v515, 0.0
      %560 = vadd.xlane.f32.xlu0 %v559
      %v561 = vpop.xlane.xlu0 %560
      %v562 = vsel %vm534, %v517, 0.0
      %563 = vadd.xlane.f32.xlu0 %v562
      %v564 = vpop.xlane.xlu0 %563
      %v565 = vsel %vm534, %v520, 0.0
      %566 = vadd.xlane.f32.xlu0 %v565
      %v567 = vpop.xlane.xlu0 %566
      %v568 = vsel %vm534, %v522, 0.0
      %569 = vadd.xlane.f32.xlu0 %v568
      %v570 = vpop.xlane.xlu0 %569
      %v571 = vsel %vm534, %v525, 0.0
      %572 = vadd.xlane.f32.xlu0 %v571
      %v573 = vpop.xlane.xlu0 %572
      %v574 = vsel %vm534, %v527, 0.0
      %575 = vadd.xlane.f32.xlu0 %v574
      %v576 = vpop.xlane.xlu0 %575
      %v577 = vsel %vm534, %v530, 0.0
      %578 = vadd.xlane.f32.xlu0 %v577
      %v579 = vpop.xlane.xlu0 %578
      %v580 = vsel %vm534, %v532, 0.0
      %581 = vadd.xlane.f32.xlu0 %v580
      %v582 = vpop.xlane.xlu0 %581
      %v583 = vrcp.pop 32.0
      %v584 = vmul.f32 32.0, %v583
      %v585 = vsub.f32 1.0, %v584
      %v586 = vmul.f32 %v583, %v585
      %v587 = vadd.f32 %v583, %v586
      %vm588 = vweird.f32 %v583
      %v589 = vsel %vm588, %v583, %v587
      %v590 = vmul.f32 %v537, %v589
      %v591 = vmul.f32 %v540, %v589
      %v592 = vmul.f32 %v543, %v589
      %v593 = vmul.f32 %v546, %v589
      %v594 = vmul.f32 %v549, %v589
      %v595 = vmul.f32 %v552, %v589
      %v596 = vmul.f32 %v555, %v589
      %v597 = vmul.f32 %v558, %v589
      %v598 = vmul.f32 %v561, %v589
      %v599 = vmul.f32 %v564, %v589
      %v600 = vmul.f32 %v567, %v589
      %v601 = vmul.f32 %v570, %v589
      %v602 = vmul.f32 %v573, %v589
      %v603 = vmul.f32 %v576, %v589
      %v604 = vmul.f32 %v579, %v589
      %v605 = vmul.f32 %v582, %v589
      %v606 = vsub.f32 %v495, %v590
      %v607 = vsub.f32 %v497, %v591
      %v608 = vsub.f32 %v500, %v592
      %v609 = vsub.f32 %v502, %v593
      %v610 = vsub.f32 %v505, %v594
      %v611 = vsub.f32 %v507, %v595
      %v612 = vsub.f32 %v510, %v596
      %v613 = vsub.f32 %v512, %v597
      %v614 = vsub.f32 %v515, %v598
      %v615 = vsub.f32 %v517, %v599
      %v616 = vsub.f32 %v520, %v600
      %v617 = vsub.f32 %v522, %v601
      %v618 = vsub.f32 %v525, %v602
      %v619 = vsub.f32 %v527, %v603
      %v620 = vsub.f32 %v530, %v604
      %v621 = vsub.f32 %v532, %v605
      %v622 = vmul.f32 %v606, %v606
      %v623 = vmul.f32 %v607, %v607
      %v624 = vmul.f32 %v608, %v608
      %v625 = vmul.f32 %v609, %v609
      %v626 = vmul.f32 %v610, %v610
      %v627 = vmul.f32 %v611, %v611
      %v628 = vmul.f32 %v612, %v612
      %v629 = vmul.f32 %v613, %v613
      %v630 = vmul.f32 %v614, %v614
      %v631 = vmul.f32 %v615, %v615
      %v632 = vmul.f32 %v616, %v616
      %v633 = vmul.f32 %v617, %v617
      %v634 = vmul.f32 %v618, %v618
      %v635 = vmul.f32 %v619, %v619
      %v636 = vmul.f32 %v620, %v620
      %v637 = vmul.f32 %v621, %v621
      %v638 = vsel %vm534, %v622, 0.0
      %639 = vadd.xlane.f32.xlu0 %v638
      %v640 = vpop.xlane.xlu0 %639
      %v641 = vsel %vm534, %v623, 0.0
      %642 = vadd.xlane.f32.xlu0 %v641
      %v643 = vpop.xlane.xlu0 %642
      %v644 = vsel %vm534, %v624, 0.0
      %645 = vadd.xlane.f32.xlu0 %v644
      %v646 = vpop.xlane.xlu0 %645
      %v647 = vsel %vm534, %v625, 0.0
      %648 = vadd.xlane.f32.xlu0 %v647
      %v649 = vpop.xlane.xlu0 %648
      %v650 = vsel %vm534, %v626, 0.0
      %651 = vadd.xlane.f32.xlu0 %v650
      %v652 = vpop.xlane.xlu0 %651
      %v653 = vsel %vm534, %v627, 0.0
      %654 = vadd.xlane.f32.xlu0 %v653
      %v655 = vpop.xlane.xlu0 %654
      %v656 = vsel %vm534, %v628, 0.0
      %657 = vadd.xlane.f32.xlu0 %v656
      %v658 = vpop.xlane.xlu0 %657
      %v659 = vsel %vm534, %v629, 0.0
      %660 = vadd.xlane.f32.xlu0 %v659
      %v661 = vpop.xlane.xlu0 %660
      %v662 = vsel %vm534, %v630, 0.0
      %663 = vadd.xlane.f32.xlu0 %v662
      %v664 = vpop.xlane.xlu0 %663
      %v665 = vsel %vm534, %v631, 0.0
      %666 = vadd.xlane.f32.xlu0 %v665
      %v667 = vpop.xlane.xlu0 %666
      %v668 = vsel %vm534, %v632, 0.0
      %669 = vadd.xlane.f32.xlu0 %v668
      %v670 = vpop.xlane.xlu0 %669
      %v671 = vsel %vm534, %v633, 0.0
      %672 = vadd.xlane.f32.xlu0 %v671
      %v673 = vpop.xlane.xlu0 %672
      %v674 = vsel %vm534, %v634, 0.0
      %675 = vadd.xlane.f32.xlu0 %v674
      %v676 = vpop.xlane.xlu0 %675
      %v677 = vsel %vm534, %v635, 0.0
      %678 = vadd.xlane.f32.xlu0 %v677
      %v679 = vpop.xlane.xlu0 %678
      %v680 = vsel %vm534, %v636, 0.0
      %681 = vadd.xlane.f32.xlu0 %v680
      %v682 = vpop.xlane.xlu0 %681
      %v683 = vsel %vm534, %v637, 0.0
      %684 = vadd.xlane.f32.xlu0 %v683
      %v685 = vpop.xlane.xlu0 %684
      %v686 = vmul.f32 %v640, %v589
      %v687 = vmul.f32 %v643, %v589
      %v688 = vmul.f32 %v646, %v589
      %v689 = vmul.f32 %v649, %v589
      %v690 = vmul.f32 %v652, %v589
      %v691 = vmul.f32 %v655, %v589
      %v692 = vmul.f32 %v658, %v589
      %v693 = vmul.f32 %v661, %v589
      %v694 = vmul.f32 %v664, %v589
      %v695 = vmul.f32 %v667, %v589
      %v696 = vmul.f32 %v670, %v589
      %v697 = vmul.f32 %v673, %v589
      %v698 = vmul.f32 %v676, %v589
      %v699 = vmul.f32 %v679, %v589
      %v700 = vmul.f32 %v682, %v589
      %v701 = vmul.f32 %v685, %v589
      %v702 = vadd.f32 %v686, 1e-05
      %v703 = vadd.f32 %v687, 1e-05
      %v704 = vadd.f32 %v688, 1e-05
      %v705 = vadd.f32 %v689, 1e-05
      %v706 = vadd.f32 %v690, 1e-05
      %v707 = vadd.f32 %v691, 1e-05
      %v708 = vadd.f32 %v692, 1e-05
      %v709 = vadd.f32 %v693, 1e-05
      %v710 = vadd.f32 %v694, 1e-05
      %v711 = vadd.f32 %v695, 1e-05
      %v712 = vadd.f32 %v696, 1e-05
      %v713 = vadd.f32 %v697, 1e-05
      %v714 = vadd.f32 %v698, 1e-05
      %v715 = vadd.f32 %v699, 1e-05
      %v716 = vadd.f32 %v700, 1e-05
      %v717 = vadd.f32 %v701, 1e-05
      %v718 = vrsqrt.pop %v702
      %v719 = vmul.f32 %v718, %v702
      %v720 = vmul.f32 %v719, %v718
      %v721 = vmul.f32 0.5, %v720
      %v722 = vsub.f32 1.5, %v721
      %v723 = vmul.f32 %v718, %v722
      %vm724 = vweird.f32 %v702
      %vm725 = vweird.f32 %v718
      %vm726 = vmor %vm724, %vm725
      %v727 = vsel %vm726, %v718, %v723
      %v728 = vrsqrt.pop %v703
      %v729 = vmul.f32 %v728, %v703
      %v730 = vmul.f32 %v729, %v728
      %v731 = vmul.f32 0.5, %v730
      %v732 = vsub.f32 1.5, %v731
      %v733 = vmul.f32 %v728, %v732
      %vm734 = vweird.f32 %v703
      %vm735 = vweird.f32 %v728
      %vm736 = vmor %vm734, %vm735
      %v737 = vsel %vm736, %v728, %v733
      %v738 = vrsqrt.pop %v704
      %v739 = vmul.f32 %v738, %v704
      %v740 = vmul.f32 %v739, %v738
      %v741 = vmul.f32 0.5, %v740
      %v742 = vsub.f32 1.5, %v741
      %v743 = vmul.f32 %v738, %v742
      %vm744 = vweird.f32 %v704
      %vm745 = vweird.f32 %v738
      %vm746 = vmor %vm744, %vm745
      %v747 = vsel %vm746, %v738, %v743
      %v748 = vrsqrt.pop %v705
      %v749 = vmul.f32 %v748, %v705
      %v750 = vmul.f32 %v749, %v748
      %v751 = vmul.f32 0.5, %v750
      %v752 = vsub.f32 1.5, %v751
      %v753 = vmul.f32 %v748, %v752
      %vm754 = vweird.f32 %v705
      %vm755 = vweird.f32 %v748
      %vm756 = vmor %vm754, %vm755
      %v757 = vsel %vm756, %v748, %v753
      %v758 = vrsqrt.pop %v706
      %v759 = vmul.f32 %v758, %v706
      %v760 = vmul.f32 %v759, %v758
      %v761 = vmul.f32 0.5, %v760
      %v762 = vsub.f32 1.5, %v761
      %v763 = vmul.f32 %v758, %v762
      %vm764 = vweird.f32 %v706
      %vm765 = vweird.f32 %v758
      %vm766 = vmor %vm764, %vm765
      %v767 = vsel %vm766, %v758, %v763
      %v768 = vrsqrt.pop %v707
      %v769 = vmul.f32 %v768, %v707
      %v770 = vmul.f32 %v769, %v768
      %v771 = vmul.f32 0.5, %v770
      %v772 = vsub.f32 1.5, %v771
      %v773 = vmul.f32 %v768, %v772
      %vm774 = vweird.f32 %v707
      %vm775 = vweird.f32 %v768
      %vm776 = vmor %vm774, %vm775
      %v777 = vsel %vm776, %v768, %v773
      %v778 = vrsqrt.pop %v708
      %v779 = vmul.f32 %v778, %v708
      %v780 = vmul.f32 %v779, %v778
      %v781 = vmul.f32 0.5, %v780
      %v782 = vsub.f32 1.5, %v781
      %v783 = vmul.f32 %v778, %v782
      %vm784 = vweird.f32 %v708
      %vm785 = vweird.f32 %v778
      %vm786 = vmor %vm784, %vm785
      %v787 = vsel %vm786, %v778, %v783
      %v788 = vrsqrt.pop %v709
      %v789 = vmul.f32 %v788, %v709
      %v790 = vmul.f32 %v789, %v788
      %v791 = vmul.f32 0.5, %v790
      %v792 = vsub.f32 1.5, %v791
      %v793 = vmul.f32 %v788, %v792
      %vm794 = vweird.f32 %v709
      %vm795 = vweird.f32 %v788
      %vm796 = vmor %vm794, %vm795
      %v797 = vsel %vm796, %v788, %v793
      %v798 = vrsqrt.pop %v710
      %v799 = vmul.f32 %v798, %v710
      %v800 = vmul.f32 %v799, %v798
      %v801 = vmul.f32 0.5, %v800
      %v802 = vsub.f32 1.5, %v801
      %v803 = vmul.f32 %v798, %v802
      %vm804 = vweird.f32 %v710
      %vm805 = vweird.f32 %v798
      %vm806 = vmor %vm804, %vm805
      %v807 = vsel %vm806, %v798, %v803
      %v808 = vrsqrt.pop %v711
      %v809 = vmul.f32 %v808, %v711
      %v810 = vmul.f32 %v809, %v808
      %v811 = vmul.f32 0.5, %v810
      %v812 = vsub.f32 1.5, %v811
      %v813 = vmul.f32 %v808, %v812
      %vm814 = vweird.f32 %v711
      %vm815 = vweird.f32 %v808
      %vm816 = vmor %vm814, %vm815
      %v817 = vsel %vm816, %v808, %v813
      %v818 = vrsqrt.pop %v712
      %v819 = vmul.f32 %v818, %v712
      %v820 = vmul.f32 %v819, %v818
      %v821 = vmul.f32 0.5, %v820
      %v822 = vsub.f32 1.5, %v821
      %v823 = vmul.f32 %v818, %v822
      %vm824 = vweird.f32 %v712
      %vm825 = vweird.f32 %v818
      %vm826 = vmor %vm824, %vm825
      %v827 = vsel %vm826, %v818, %v823
      %v828 = vrsqrt.pop %v713
      %v829 = vmul.f32 %v828, %v713
      %v830 = vmul.f32 %v829, %v828
      %v831 = vmul.f32 0.5, %v830
      %v832 = vsub.f32 1.5, %v831
      %v833 = vmul.f32 %v828, %v832
      %vm834 = vweird.f32 %v713
      %vm835 = vweird.f32 %v828
      %vm836 = vmor %vm834, %vm835
      %v837 = vsel %vm836, %v828, %v833
      %v838 = vrsqrt.pop %v714
      %v839 = vmul.f32 %v838, %v714
      %v840 = vmul.f32 %v839, %v838
      %v841 = vmul.f32 0.5, %v840
      %v842 = vsub.f32 1.5, %v841
      %v843 = vmul.f32 %v838, %v842
      %vm844 = vweird.f32 %v714
      %vm845 = vweird.f32 %v838
      %vm846 = vmor %vm844, %vm845
      %v847 = vsel %vm846, %v838, %v843
      %v848 = vrsqrt.pop %v715
      %v849 = vmul.f32 %v848, %v715
      %v850 = vmul.f32 %v849, %v848
      %v851 = vmul.f32 0.5, %v850
      %v852 = vsub.f32 1.5, %v851
      %v853 = vmul.f32 %v848, %v852
      %vm854 = vweird.f32 %v715
      %vm855 = vweird.f32 %v848
      %vm856 = vmor %vm854, %vm855
      %v857 = vsel %vm856, %v848, %v853
      %v858 = vrsqrt.pop %v716
      %v859 = vmul.f32 %v858, %v716
      %v860 = vmul.f32 %v859, %v858
      %v861 = vmul.f32 0.5, %v860
      %v862 = vsub.f32 1.5, %v861
      %v863 = vmul.f32 %v858, %v862
      %vm864 = vweird.f32 %v716
      %vm865 = vweird.f32 %v858
      %vm866 = vmor %vm864, %vm865
      %v867 = vsel %vm866, %v858, %v863
      %v868 = vrsqrt.pop %v717
      %v869 = vmul.f32 %v868, %v717
      %v870 = vmul.f32 %v869, %v868
      %v871 = vmul.f32 0.5, %v870
      %v872 = vsub.f32 1.5, %v871
      %v873 = vmul.f32 %v868, %v872
      %vm874 = vweird.f32 %v717
      %vm875 = vweird.f32 %v868
      %vm876 = vmor %vm874, %vm875
      %v877 = vsel %vm876, %v868, %v873
      %v878 = vmul.f32 %v606, %v727
      %v879 = vmul.f32 %v607, %v737
      %v880 = vmul.f32 %v608, %v747
      %v881 = vmul.f32 %v609, %v757
      %v882 = vmul.f32 %v610, %v767
      %v883 = vmul.f32 %v611, %v777
      %v884 = vmul.f32 %v612, %v787
      %v885 = vmul.f32 %v613, %v797
      %v886 = vmul.f32 %v614, %v807
      %v887 = vmul.f32 %v615, %v817
      %v888 = vmul.f32 %v616, %v827
      %v889 = vmul.f32 %v617, %v837
      %v890 = vmul.f32 %v618, %v847
      %v891 = vmul.f32 %v619, %v857
      %v892 = vmul.f32 %v620, %v867
      %v893 = vmul.f32 %v621, %v877
      %v894 = vperm.slane %v393, 1
      %v895 = vmul.f32 %v878, %v894
      %v896 = vmul.f32 %v879, %v894
      %v897 = vmul.f32 %v880, %v894
      %v898 = vmul.f32 %v881, %v894
      %v899 = vmul.f32 %v882, %v894
      %v900 = vmul.f32 %v883, %v894
      %v901 = vmul.f32 %v884, %v894
      %v902 = vmul.f32 %v885, %v894
      %v903 = vmul.f32 %v886, %v894
      %v904 = vmul.f32 %v887, %v894
      %v905 = vmul.f32 %v888, %v894
      %v906 = vmul.f32 %v889, %v894
      %v907 = vmul.f32 %v890, %v894
      %v908 = vmul.f32 %v891, %v894
      %v909 = vmul.f32 %v892, %v894
      %v910 = vmul.f32 %v893, %v894
      %v911 = vperm.slane %v393, 2
      %v912 = vadd.f32 %v895, %v911
      %v913 = vadd.f32 %v896, %v911
      %v914 = vadd.f32 %v897, %v911
      %v915 = vadd.f32 %v898, %v911
      %v916 = vadd.f32 %v899, %v911
      %v917 = vadd.f32 %v900, %v911
      %v918 = vadd.f32 %v901, %v911
      %v919 = vadd.f32 %v902, %v911
      %v920 = vadd.f32 %v903, %v911
      %v921 = vadd.f32 %v904, %v911
      %v922 = vadd.f32 %v905, %v911
      %v923 = vadd.f32 %v906, %v911
      %v924 = vadd.f32 %v907, %v911
      %v925 = vadd.f32 %v908, %v911
      %v926 = vadd.f32 %v909, %v911
      %v927 = vadd.f32 %v910, %v911
      %v928 = vpack.c.bf16 %v913, %v912
      %v929 = vpack.c.bf16 %v915, %v914
      %v930 = vpack.c.bf16 %v917, %v916
      %v931 = vpack.c.bf16 %v919, %v918
      %v932 = vpack.c.bf16 %v921, %v920
      %v933 = vpack.c.bf16 %v923, %v922
      %v934 = vpack.c.bf16 %v925, %v924
      %v935 = vpack.c.bf16 %v927, %v926
      %v936 = vld [vmem:[%s4] sm:$0xf]
      %v937 = vld [vmem:[%s4 + $0x4] sm:$0xf]
      %v938 = vld [vmem:[%s4 + $0x8] sm:$0xf]
      %v939 = vld [vmem:[%s4 + $0xc] sm:$0xf]
      %v944 = vunpack.c.l.b16 %v936
      %v945 = vunpack.c.l.b16 %v937
      %v946 = vunpack.c.l.b16 %v938
      %v947 = vunpack.c.l.b16 %v939
      %v948 = vpack.c.b16 %v945, %v944
      %v949 = vpack.c.b16 %v947, %v946
      %v953 = vsel %vm534, %v928, 0
      %v956 = vsel %vm534, %v929, 0
      %v959 = vsel %vm534, %v930, 0
      %v962 = vsel %vm534, %v931, 0
      %v965 = vsel %vm534, %v932, 0
      %v968 = vsel %vm534, %v933, 0
      %v971 = vsel %vm534, %v934, 0
      %v974 = vsel %vm534, %v935, 0
      %976 = vmatpush.bf16.msra.mxu0 0
      %977 = vmatpush.bf16.msra.mxu0 0
      %978 = vmatpush.bf16.msra.mxu0 0
      %979 = vmatpush.bf16.msra.mxu0 0
      %980 = vmatpush.bf16.msra.mxu0 0
      %981 = vmatpush.bf16.msra.mxu0 0
      %982 = vmatpush.bf16.msra.mxu0 %v949
      %983 = vmatpush.bf16.msra.mxu0 %v948
      %984 = vmatmul.bf16.gmra.mxu0 %v953
      %v985 = vpop.f32.mrf.mxu0
      %v986 = vadd.f32 0.0, %v985
      %v987 = vpop.f32.mrf.mxu0
      %v988 = vadd.f32 0.0, %v987
      %989 = vmatmul.bf16.gmra.mxu0 %v956
      %v990 = vpop.f32.mrf.mxu0
      %v991 = vadd.f32 0.0, %v990
      %v992 = vpop.f32.mrf.mxu0
      %v993 = vadd.f32 0.0, %v992
      %994 = vmatmul.bf16.gmra.mxu0 %v959
      %v995 = vpop.f32.mrf.mxu0
      %v996 = vadd.f32 0.0, %v995
      %v997 = vpop.f32.mrf.mxu0
      %v998 = vadd.f32 0.0, %v997
      %999 = vmatmul.bf16.gmra.mxu0 %v962
      %v1000 = vpop.f32.mrf.mxu0
      %v1001 = vadd.f32 0.0, %v1000
      %v1002 = vpop.f32.mrf.mxu0
      %v1003 = vadd.f32 0.0, %v1002
      %1004 = vmatmul.bf16.gmra.mxu0 %v965
      %v1005 = vpop.f32.mrf.mxu0
      %v1006 = vadd.f32 0.0, %v1005
      %v1007 = vpop.f32.mrf.mxu0
      %v1008 = vadd.f32 0.0, %v1007
      %1009 = vmatmul.bf16.gmra.mxu0 %v968
      %v1010 = vpop.f32.mrf.mxu0
      %v1011 = vadd.f32 0.0, %v1010
      %v1012 = vpop.f32.mrf.mxu0
      %v1013 = vadd.f32 0.0, %v1012
      %1014 = vmatmul.bf16.gmra.mxu0 %v971
      %v1015 = vpop.f32.mrf.mxu0
      %v1016 = vadd.f32 0.0, %v1015
      %v1017 = vpop.f32.mrf.mxu0
      %v1018 = vadd.f32 0.0, %v1017
      %1019 = vmatmul.bf16.gmra.mxu0 %v974
      %v1020 = vpop.f32.mrf.mxu0
      %v1021 = vadd.f32 0.0, %v1020
      %v1022 = vpop.f32.mrf.mxu0
      %v1023 = vadd.f32 0.0, %v1022
      %1024 = vdwg.mxu0
      %v1025 = vpack.c.bf16 %v988, %v986
      %v1026 = vpack.c.bf16 %v993, %v991
      %v1027 = vpack.c.bf16 %v998, %v996
      %v1028 = vpack.c.bf16 %v1003, %v1001
      %v1029 = vpack.c.bf16 %v1008, %v1006
      %v1030 = vpack.c.bf16 %v1013, %v1011
      %v1031 = vpack.c.bf16 %v1018, %v1016
      %v1032 = vpack.c.bf16 %v1023, %v1021
      %1041 = vrot.lane.b32.xlu0 %v1025, 96
      %v1042 = vpop.permute.xlu0 %1041
      %1043 = vrot.lane.b32.xlu0 %v1026, 96
      %v1044 = vpop.permute.xlu0 %1043
      %1045 = vrot.lane.b32.xlu0 %v1027, 96
      %v1046 = vpop.permute.xlu0 %1045
      %1047 = vrot.lane.b32.xlu0 %v1028, 96
      %v1048 = vpop.permute.xlu0 %1047
      %1049 = vrot.lane.b32.xlu0 %v1029, 96
      %v1050 = vpop.permute.xlu0 %1049
      %1051 = vrot.lane.b32.xlu0 %v1030, 96
      %v1052 = vpop.permute.xlu0 %1051
      %1053 = vrot.lane.b32.xlu0 %v1031, 96
      %v1054 = vpop.permute.xlu0 %1053
      %1055 = vrot.lane.b32.xlu0 %v1032, 96
      %v1056 = vpop.permute.xlu0 %1055
      %v1058 = vsel %vm534, %v1025, 0
      %v1061 = vsel %vm534, %v1026, 0
      %v1064 = vsel %vm534, %v1027, 0
      %v1067 = vsel %vm534, %v1028, 0
      %v1070 = vsel %vm534, %v1029, 0
      %v1073 = vsel %vm534, %v1030, 0
      %v1076 = vsel %vm534, %v1031, 0
      %v1079 = vsel %vm534, %v1032, 0
      %v1082 = vsel %vm534, %v1042, 0
      %v1085 = vsel %vm534, %v1044, 0
      %v1088 = vsel %vm534, %v1046, 0
      %v1091 = vsel %vm534, %v1048, 0
      %v1094 = vsel %vm534, %v1050, 0
      %v1097 = vsel %vm534, %v1052, 0
      %v1100 = vsel %vm534, %v1054, 0
      %v1103 = vsel %vm534, %v1056, 0
      %1105 = vmatpush.bf16.xpose.msra.mxu0 %v1103
      %1106 = vmatpush.bf16.xpose.msra.mxu0 %v1100
      %1107 = vmatpush.bf16.xpose.msra.mxu0 %v1097
      %1108 = vmatpush.bf16.xpose.msra.mxu0 %v1094
      %1109 = vmatpush.bf16.xpose.msra.mxu0 %v1091
      %1110 = vmatpush.bf16.xpose.msra.mxu0 %v1088
      %1111 = vmatpush.bf16.xpose.msra.mxu0 %v1085
      %1112 = vmatpush.bf16.xpose.msra.mxu0 %v1082
      %1113 = vmatmul.bf16.gmra.mxu0 %v1058
      %v1114 = vpop.f32.mrf.mxu0
      %v1115 = vadd.f32 0.0, %v1114
      %v1116 = vpop.f32.mrf.mxu0
      %v1117 = vadd.f32 0.0, %v1116
      %1118 = vmatmul.bf16.gmra.mxu0 %v1061
      %v1119 = vpop.f32.mrf.mxu0
      %v1120 = vadd.f32 0.0, %v1119
      %v1121 = vpop.f32.mrf.mxu0
      %v1122 = vadd.f32 0.0, %v1121
      %1123 = vmatmul.bf16.gmra.mxu0 %v1064
      %v1124 = vpop.f32.mrf.mxu0
      %v1125 = vadd.f32 0.0, %v1124
      %v1126 = vpop.f32.mrf.mxu0
      %v1127 = vadd.f32 0.0, %v1126
      %1128 = vmatmul.bf16.gmra.mxu0 %v1067
      %v1129 = vpop.f32.mrf.mxu0
      %v1130 = vadd.f32 0.0, %v1129
      %v1131 = vpop.f32.mrf.mxu0
      %v1132 = vadd.f32 0.0, %v1131
      %1133 = vmatmul.bf16.gmra.mxu0 %v1070
      %v1134 = vpop.f32.mrf.mxu0
      %v1135 = vadd.f32 0.0, %v1134
      %v1136 = vpop.f32.mrf.mxu0
      %v1137 = vadd.f32 0.0, %v1136
      %1138 = vmatmul.bf16.gmra.mxu0 %v1073
      %v1139 = vpop.f32.mrf.mxu0
      %v1140 = vadd.f32 0.0, %v1139
      %v1141 = vpop.f32.mrf.mxu0
      %v1142 = vadd.f32 0.0, %v1141
      %1143 = vmatmul.bf16.gmra.mxu0 %v1076
      %v1144 = vpop.f32.mrf.mxu0
      %v1145 = vadd.f32 0.0, %v1144
      %v1146 = vpop.f32.mrf.mxu0
      %v1147 = vadd.f32 0.0, %v1146
      %1148 = vmatmul.bf16.gmra.mxu0 %v1079
      %v1149 = vpop.f32.mrf.mxu0
      %v1150 = vadd.f32 0.0, %v1149
      %v1151 = vpop.f32.mrf.mxu0
      %v1152 = vadd.f32 0.0, %v1151
      %1153 = vdwg.mxu0
      %v1154 = vmul.f32 %v1115, 0.17677669
      %v1155 = vmul.f32 %v1117, 0.17677669
      %v1156 = vmul.f32 %v1120, 0.17677669
      %v1157 = vmul.f32 %v1122, 0.17677669
      %v1158 = vmul.f32 %v1125, 0.17677669
      %v1159 = vmul.f32 %v1127, 0.17677669
      %v1160 = vmul.f32 %v1130, 0.17677669
      %v1161 = vmul.f32 %v1132, 0.17677669
      %v1162 = vmul.f32 %v1135, 0.17677669
      %v1163 = vmul.f32 %v1137, 0.17677669
      %v1164 = vmul.f32 %v1140, 0.17677669
      %v1165 = vmul.f32 %v1142, 0.17677669
      %v1166 = vmul.f32 %v1145, 0.17677669
      %v1167 = vmul.f32 %v1147, 0.17677669
      %v1168 = vmul.f32 %v1150, 0.17677669
      %v1169 = vmul.f32 %v1152, 0.17677669
      %v1170 = vsub.f32 %v393, 1.0
      %v1171 = vmul.f32 %v1170, 1e+30
      %v1172 = vperm.slane %v1171, 7
      %v1173 = vadd.f32 %v1154, %v1172
      %v1174 = vadd.f32 %v1155, %v1172
      %v1175 = vadd.f32 %v1156, %v1172
      %v1176 = vadd.f32 %v1157, %v1172
      %v1177 = vadd.f32 %v1158, %v1172
      %v1178 = vadd.f32 %v1159, %v1172
      %v1179 = vadd.f32 %v1160, %v1172
      %v1180 = vadd.f32 %v1161, %v1172
      %v1181 = vadd.f32 %v1162, %v1172
      %v1182 = vadd.f32 %v1163, %v1172
      %v1183 = vadd.f32 %v1164, %v1172
      %v1184 = vadd.f32 %v1165, %v1172
      %v1185 = vadd.f32 %v1166, %v1172
      %v1186 = vadd.f32 %v1167, %v1172
      %v1187 = vadd.f32 %v1168, %v1172
      %v1188 = vadd.f32 %v1169, %v1172
      %1189 = vmax.xlane.f32.xlu0 %v1173
      %v1190 = vpop.xlane.xlu0 %1189
      %1191 = vmax.xlane.f32.xlu0 %v1174
      %v1192 = vpop.xlane.xlu0 %1191
      %1193 = vmax.xlane.f32.xlu0 %v1175
      %v1194 = vpop.xlane.xlu0 %1193
      %1195 = vmax.xlane.f32.xlu0 %v1176
      %v1196 = vpop.xlane.xlu0 %1195
      %1197 = vmax.xlane.f32.xlu0 %v1177
      %v1198 = vpop.xlane.xlu0 %1197
      %1199 = vmax.xlane.f32.xlu0 %v1178
      %v1200 = vpop.xlane.xlu0 %1199
      %1201 = vmax.xlane.f32.xlu0 %v1179
      %v1202 = vpop.xlane.xlu0 %1201
      %1203 = vmax.xlane.f32.xlu0 %v1180
      %v1204 = vpop.xlane.xlu0 %1203
      %1205 = vmax.xlane.f32.xlu0 %v1181
      %v1206 = vpop.xlane.xlu0 %1205
      %1207 = vmax.xlane.f32.xlu0 %v1182
      %v1208 = vpop.xlane.xlu0 %1207
      %1209 = vmax.xlane.f32.xlu0 %v1183
      %v1210 = vpop.xlane.xlu0 %1209
      %1211 = vmax.xlane.f32.xlu0 %v1184
      %v1212 = vpop.xlane.xlu0 %1211
      %1213 = vmax.xlane.f32.xlu0 %v1185
      %v1214 = vpop.xlane.xlu0 %1213
      %1215 = vmax.xlane.f32.xlu0 %v1186
      %v1216 = vpop.xlane.xlu0 %1215
      %1217 = vmax.xlane.f32.xlu0 %v1187
      %v1218 = vpop.xlane.xlu0 %1217
      %1219 = vmax.xlane.f32.xlu0 %v1188
      %v1220 = vpop.xlane.xlu0 %1219
      %v1221 = vsub.f32 %v1173, %v1190
      %v1222 = vsub.f32 %v1174, %v1192
      %v1223 = vsub.f32 %v1175, %v1194
      %v1224 = vsub.f32 %v1176, %v1196
      %v1225 = vsub.f32 %v1177, %v1198
      %v1226 = vsub.f32 %v1178, %v1200
      %v1227 = vsub.f32 %v1179, %v1202
      %v1228 = vsub.f32 %v1180, %v1204
      %v1229 = vsub.f32 %v1181, %v1206
      %v1230 = vsub.f32 %v1182, %v1208
      %v1231 = vsub.f32 %v1183, %v1210
      %v1232 = vsub.f32 %v1184, %v1212
      %v1233 = vsub.f32 %v1185, %v1214
      %v1234 = vsub.f32 %v1186, %v1216
      %v1235 = vsub.f32 %v1187, %v1218
      %v1236 = vsub.f32 %v1188, %v1220
      %v1237 = vmul.f32 %v1221, 1.442695
      %v1238 = vpow.pop %v1237
      %v1239 = vmul.f32 %v1222, 1.442695
      %v1240 = vpow.pop %v1239
      %v1241 = vmul.f32 %v1223, 1.442695
      %v1242 = vpow.pop %v1241
      %v1243 = vmul.f32 %v1224, 1.442695
      %v1244 = vpow.pop %v1243
      %v1245 = vmul.f32 %v1225, 1.442695
      %v1246 = vpow.pop %v1245
      %v1247 = vmul.f32 %v1226, 1.442695
      %v1248 = vpow.pop %v1247
      %v1249 = vmul.f32 %v1227, 1.442695
      %v1250 = vpow.pop %v1249
      %v1251 = vmul.f32 %v1228, 1.442695
      %v1252 = vpow.pop %v1251
      %v1253 = vmul.f32 %v1229, 1.442695
      %v1254 = vpow.pop %v1253
      %v1255 = vmul.f32 %v1230, 1.442695
      %v1256 = vpow.pop %v1255
      %v1257 = vmul.f32 %v1231, 1.442695
      %v1258 = vpow.pop %v1257
      %v1259 = vmul.f32 %v1232, 1.442695
      %v1260 = vpow.pop %v1259
      %v1261 = vmul.f32 %v1233, 1.442695
      %v1262 = vpow.pop %v1261
      %v1263 = vmul.f32 %v1234, 1.442695
      %v1264 = vpow.pop %v1263
      %v1265 = vmul.f32 %v1235, 1.442695
      %v1266 = vpow.pop %v1265
      %v1267 = vmul.f32 %v1236, 1.442695
      %v1268 = vpow.pop %v1267
      %1269 = vadd.xlane.f32.xlu0 %v1238
      %v1270 = vpop.xlane.xlu0 %1269
      %1271 = vadd.xlane.f32.xlu0 %v1240
      %v1272 = vpop.xlane.xlu0 %1271
      %1273 = vadd.xlane.f32.xlu0 %v1242
      %v1274 = vpop.xlane.xlu0 %1273
      %1275 = vadd.xlane.f32.xlu0 %v1244
      %v1276 = vpop.xlane.xlu0 %1275
      %1277 = vadd.xlane.f32.xlu0 %v1246
      %v1278 = vpop.xlane.xlu0 %1277
      %1279 = vadd.xlane.f32.xlu0 %v1248
      %v1280 = vpop.xlane.xlu0 %1279
      %1281 = vadd.xlane.f32.xlu0 %v1250
      %v1282 = vpop.xlane.xlu0 %1281
      %1283 = vadd.xlane.f32.xlu0 %v1252
      %v1284 = vpop.xlane.xlu0 %1283
      %1285 = vadd.xlane.f32.xlu0 %v1254
      %v1286 = vpop.xlane.xlu0 %1285
      %1287 = vadd.xlane.f32.xlu0 %v1256
      %v1288 = vpop.xlane.xlu0 %1287
      %1289 = vadd.xlane.f32.xlu0 %v1258
      %v1290 = vpop.xlane.xlu0 %1289
      %1291 = vadd.xlane.f32.xlu0 %v1260
      %v1292 = vpop.xlane.xlu0 %1291
      %1293 = vadd.xlane.f32.xlu0 %v1262
      %v1294 = vpop.xlane.xlu0 %1293
      %1295 = vadd.xlane.f32.xlu0 %v1264
      %v1296 = vpop.xlane.xlu0 %1295
      %1297 = vadd.xlane.f32.xlu0 %v1266
      %v1298 = vpop.xlane.xlu0 %1297
      %1299 = vadd.xlane.f32.xlu0 %v1268
      %v1300 = vpop.xlane.xlu0 %1299
      %v1301 = vrcp.pop %v1270
      %v1302 = vrcp.pop %v1272
      %v1303 = vrcp.pop %v1274
      %v1304 = vrcp.pop %v1276
      %v1305 = vrcp.pop %v1278
      %v1306 = vrcp.pop %v1280
      %v1307 = vrcp.pop %v1282
      %v1308 = vrcp.pop %v1284
      %v1309 = vrcp.pop %v1286
      %v1310 = vrcp.pop %v1288
      %v1311 = vrcp.pop %v1290
      %v1312 = vrcp.pop %v1292
      %v1313 = vrcp.pop %v1294
      %v1314 = vrcp.pop %v1296
      %v1315 = vrcp.pop %v1298
      %v1316 = vrcp.pop %v1300
      %v1317 = vmul.f32 %v1238, %v1301
      %v1318 = vmul.f32 %v1240, %v1302
      %v1319 = vmul.f32 %v1242, %v1303
      %v1320 = vmul.f32 %v1244, %v1304
      %v1321 = vmul.f32 %v1246, %v1305
      %v1322 = vmul.f32 %v1248, %v1306
      %v1323 = vmul.f32 %v1250, %v1307
      %v1324 = vmul.f32 %v1252, %v1308
      %v1325 = vmul.f32 %v1254, %v1309
      %v1326 = vmul.f32 %v1256, %v1310
      %v1327 = vmul.f32 %v1258, %v1311
      %v1328 = vmul.f32 %v1260, %v1312
      %v1329 = vmul.f32 %v1262, %v1313
      %v1330 = vmul.f32 %v1264, %v1314
      %v1331 = vmul.f32 %v1266, %v1315
      %v1332 = vmul.f32 %v1268, %v1316
      %v1333 = vpack.c.bf16 %v1318, %v1317
      %v1334 = vpack.c.bf16 %v1320, %v1319
      %v1335 = vpack.c.bf16 %v1322, %v1321
      %v1336 = vpack.c.bf16 %v1324, %v1323
      %v1337 = vpack.c.bf16 %v1326, %v1325
      %v1338 = vpack.c.bf16 %v1328, %v1327
      %v1339 = vpack.c.bf16 %v1330, %v1329
      %v1340 = vpack.c.bf16 %v1332, %v1331
      %1341 = vrot.lane.b32.xlu0 %v1025, 64
      %v1342 = vpop.permute.xlu0 %1341
      %1343 = vrot.lane.b32.xlu0 %v1026, 64
      %v1344 = vpop.permute.xlu0 %1343
      %1345 = vrot.lane.b32.xlu0 %v1027, 64
      %v1346 = vpop.permute.xlu0 %1345
      %1347 = vrot.lane.b32.xlu0 %v1028, 64
      %v1348 = vpop.permute.xlu0 %1347
      %1349 = vrot.lane.b32.xlu0 %v1029, 64
      %v1350 = vpop.permute.xlu0 %1349
      %1351 = vrot.lane.b32.xlu0 %v1030, 64
      %v1352 = vpop.permute.xlu0 %1351
      %1353 = vrot.lane.b32.xlu0 %v1031, 64
      %v1354 = vpop.permute.xlu0 %1353
      %1355 = vrot.lane.b32.xlu0 %v1032, 64
      %v1356 = vpop.permute.xlu0 %1355
      %1365 = vmatpush.bf16.msra.mxu0 %v1356
      %1366 = vmatpush.bf16.msra.mxu0 %v1354
      %1367 = vmatpush.bf16.msra.mxu0 %v1352
      %1368 = vmatpush.bf16.msra.mxu0 %v1350
      %1369 = vmatpush.bf16.msra.mxu0 %v1348
      %1370 = vmatpush.bf16.msra.mxu0 %v1346
      %1371 = vmatpush.bf16.msra.mxu0 %v1344
      %1372 = vmatpush.bf16.msra.mxu0 %v1342
      %1373 = vmatmul.bf16.gmra.mxu0 %v1333
      %v1374 = vpop.f32.mrf.mxu0
      %v1375 = vadd.f32 0.0, %v1374
      %v1376 = vpop.f32.mrf.mxu0
      %v1377 = vadd.f32 0.0, %v1376
      %1378 = vmatmul.bf16.gmra.mxu0 %v1334
      %v1379 = vpop.f32.mrf.mxu0
      %v1380 = vadd.f32 0.0, %v1379
      %v1381 = vpop.f32.mrf.mxu0
      %v1382 = vadd.f32 0.0, %v1381
      %1383 = vmatmul.bf16.gmra.mxu0 %v1335
      %v1384 = vpop.f32.mrf.mxu0
      %v1385 = vadd.f32 0.0, %v1384
      %v1386 = vpop.f32.mrf.mxu0
      %v1387 = vadd.f32 0.0, %v1386
      %1388 = vmatmul.bf16.gmra.mxu0 %v1336
      %v1389 = vpop.f32.mrf.mxu0
      %v1390 = vadd.f32 0.0, %v1389
      %v1391 = vpop.f32.mrf.mxu0
      %v1392 = vadd.f32 0.0, %v1391
      %1393 = vmatmul.bf16.gmra.mxu0 %v1337
      %v1394 = vpop.f32.mrf.mxu0
      %v1395 = vadd.f32 0.0, %v1394
      %v1396 = vpop.f32.mrf.mxu0
      %v1397 = vadd.f32 0.0, %v1396
      %1398 = vmatmul.bf16.gmra.mxu0 %v1338
      %v1399 = vpop.f32.mrf.mxu0
      %v1400 = vadd.f32 0.0, %v1399
      %v1401 = vpop.f32.mrf.mxu0
      %v1402 = vadd.f32 0.0, %v1401
      %1403 = vmatmul.bf16.gmra.mxu0 %v1339
      %v1404 = vpop.f32.mrf.mxu0
      %v1405 = vadd.f32 0.0, %v1404
      %v1406 = vpop.f32.mrf.mxu0
      %v1407 = vadd.f32 0.0, %v1406
      %1408 = vmatmul.bf16.gmra.mxu0 %v1340
      %v1409 = vpop.f32.mrf.mxu0
      %v1410 = vadd.f32 0.0, %v1409
      %v1411 = vpop.f32.mrf.mxu0
      %v1412 = vadd.f32 0.0, %v1411
      %1413 = vdwg.mxu0
      %v1414 = vpack.c.bf16 %v1377, %v1375
      %v1415 = vpack.c.bf16 %v1382, %v1380
      %v1416 = vpack.c.bf16 %v1387, %v1385
      %v1417 = vpack.c.bf16 %v1392, %v1390
      %v1418 = vpack.c.bf16 %v1397, %v1395
      %v1419 = vpack.c.bf16 %v1402, %v1400
      %v1420 = vpack.c.bf16 %v1407, %v1405
      %v1421 = vpack.c.bf16 %v1412, %v1410
      %v1422 = vld [vmem:[%s5] sm:$0xf]
      %v1423 = vld [vmem:[%s5 + $0x4] sm:$0xf]
      %v1424 = vld [vmem:[%s5 + $0x8] sm:$0xf]
      %v1425 = vld [vmem:[%s5 + $0xc] sm:$0xf]
      %v1430 = vunpack.c.l.b16 %v1422
      %v1431 = vunpack.c.l.b16 %v1423
      %v1432 = vunpack.c.l.b16 %v1424
      %v1433 = vunpack.c.l.b16 %v1425
      %v1434 = vpack.c.b16 %v1431, %v1430
      %v1435 = vpack.c.b16 %v1433, %v1432
      %v1439 = vsel %vm534, %v1414, 0
      %v1442 = vsel %vm534, %v1415, 0
      %v1445 = vsel %vm534, %v1416, 0
      %v1448 = vsel %vm534, %v1417, 0
      %v1451 = vsel %vm534, %v1418, 0
      %v1454 = vsel %vm534, %v1419, 0
      %v1457 = vsel %vm534, %v1420, 0
      %v1460 = vsel %vm534, %v1421, 0
      %1462 = vmatpush.bf16.msra.mxu0 0
      %1463 = vmatpush.bf16.msra.mxu0 0
      %1464 = vmatpush.bf16.msra.mxu0 0
      %1465 = vmatpush.bf16.msra.mxu0 0
      %1466 = vmatpush.bf16.msra.mxu0 0
      %1467 = vmatpush.bf16.msra.mxu0 0
      %1468 = vmatpush.bf16.msra.mxu0 %v1435
      %1469 = vmatpush.bf16.msra.mxu0 %v1434
      %1470 = vmatmul.bf16.gmra.mxu0 %v1439
      %v1471 = vpop.f32.mrf.mxu0
      %v1472 = vadd.f32 0.0, %v1471
      %v1473 = vpop.f32.mrf.mxu0
      %v1474 = vadd.f32 0.0, %v1473
      %1475 = vmatmul.bf16.gmra.mxu0 %v1442
      %v1476 = vpop.f32.mrf.mxu0
      %v1477 = vadd.f32 0.0, %v1476
      %v1478 = vpop.f32.mrf.mxu0
      %v1479 = vadd.f32 0.0, %v1478
      %1480 = vmatmul.bf16.gmra.mxu0 %v1445
      %v1481 = vpop.f32.mrf.mxu0
      %v1482 = vadd.f32 0.0, %v1481
      %v1483 = vpop.f32.mrf.mxu0
      %v1484 = vadd.f32 0.0, %v1483
      %1485 = vmatmul.bf16.gmra.mxu0 %v1448
      %v1486 = vpop.f32.mrf.mxu0
      %v1487 = vadd.f32 0.0, %v1486
      %v1488 = vpop.f32.mrf.mxu0
      %v1489 = vadd.f32 0.0, %v1488
      %1490 = vmatmul.bf16.gmra.mxu0 %v1451
      %v1491 = vpop.f32.mrf.mxu0
      %v1492 = vadd.f32 0.0, %v1491
      %v1493 = vpop.f32.mrf.mxu0
      %v1494 = vadd.f32 0.0, %v1493
      %1495 = vmatmul.bf16.gmra.mxu0 %v1454
      %v1496 = vpop.f32.mrf.mxu0
      %v1497 = vadd.f32 0.0, %v1496
      %v1498 = vpop.f32.mrf.mxu0
      %v1499 = vadd.f32 0.0, %v1498
      %1500 = vmatmul.bf16.gmra.mxu0 %v1457
      %v1501 = vpop.f32.mrf.mxu0
      %v1502 = vadd.f32 0.0, %v1501
      %v1503 = vpop.f32.mrf.mxu0
      %v1504 = vadd.f32 0.0, %v1503
      %1505 = vmatmul.bf16.gmra.mxu0 %v1460
      %v1506 = vpop.f32.mrf.mxu0
      %v1507 = vadd.f32 0.0, %v1506
      %v1508 = vpop.f32.mrf.mxu0
      %v1509 = vadd.f32 0.0, %v1508
      %1510 = vdwg.mxu0
      %v1511 = vadd.f32 %v495, %v1472
      %v1512 = vadd.f32 %v497, %v1474
      %v1513 = vadd.f32 %v500, %v1477
      %v1514 = vadd.f32 %v502, %v1479
      %v1515 = vadd.f32 %v505, %v1482
      %v1516 = vadd.f32 %v507, %v1484
      %v1517 = vadd.f32 %v510, %v1487
      %v1518 = vadd.f32 %v512, %v1489
      %v1519 = vadd.f32 %v515, %v1492
      %v1520 = vadd.f32 %v517, %v1494
      %v1521 = vadd.f32 %v520, %v1497
      %v1522 = vadd.f32 %v522, %v1499
      %v1523 = vadd.f32 %v525, %v1502
      %v1524 = vadd.f32 %v527, %v1504
      %v1525 = vadd.f32 %v530, %v1507
      %v1526 = vadd.f32 %v532, %v1509
      %v1527 = vsel %vm534, %v1511, 0.0
      %1528 = vadd.xlane.f32.xlu0 %v1527
      %v1529 = vpop.xlane.xlu0 %1528
      %v1530 = vsel %vm534, %v1512, 0.0
      %1531 = vadd.xlane.f32.xlu0 %v1530
      %v1532 = vpop.xlane.xlu0 %1531
      %v1533 = vsel %vm534, %v1513, 0.0
      %1534 = vadd.xlane.f32.xlu0 %v1533
      %v1535 = vpop.xlane.xlu0 %1534
      %v1536 = vsel %vm534, %v1514, 0.0
      %1537 = vadd.xlane.f32.xlu0 %v1536
      %v1538 = vpop.xlane.xlu0 %1537
      %v1539 = vsel %vm534, %v1515, 0.0
      %1540 = vadd.xlane.f32.xlu0 %v1539
      %v1541 = vpop.xlane.xlu0 %1540
      %v1542 = vsel %vm534, %v1516, 0.0
      %1543 = vadd.xlane.f32.xlu0 %v1542
      %v1544 = vpop.xlane.xlu0 %1543
      %v1545 = vsel %vm534, %v1517, 0.0
      %1546 = vadd.xlane.f32.xlu0 %v1545
      %v1547 = vpop.xlane.xlu0 %1546
      %v1548 = vsel %vm534, %v1518, 0.0
      %1549 = vadd.xlane.f32.xlu0 %v1548
      %v1550 = vpop.xlane.xlu0 %1549
      %v1551 = vsel %vm534, %v1519, 0.0
      %1552 = vadd.xlane.f32.xlu0 %v1551
      %v1553 = vpop.xlane.xlu0 %1552
      %v1554 = vsel %vm534, %v1520, 0.0
      %1555 = vadd.xlane.f32.xlu0 %v1554
      %v1556 = vpop.xlane.xlu0 %1555
      %v1557 = vsel %vm534, %v1521, 0.0
      %1558 = vadd.xlane.f32.xlu0 %v1557
      %v1559 = vpop.xlane.xlu0 %1558
      %v1560 = vsel %vm534, %v1522, 0.0
      %1561 = vadd.xlane.f32.xlu0 %v1560
      %v1562 = vpop.xlane.xlu0 %1561
      %v1563 = vsel %vm534, %v1523, 0.0
      %1564 = vadd.xlane.f32.xlu0 %v1563
      %v1565 = vpop.xlane.xlu0 %1564
      %v1566 = vsel %vm534, %v1524, 0.0
      %1567 = vadd.xlane.f32.xlu0 %v1566
      %v1568 = vpop.xlane.xlu0 %1567
      %v1569 = vsel %vm534, %v1525, 0.0
      %1570 = vadd.xlane.f32.xlu0 %v1569
      %v1571 = vpop.xlane.xlu0 %1570
      %v1572 = vsel %vm534, %v1526, 0.0
      %1573 = vadd.xlane.f32.xlu0 %v1572
      %v1574 = vpop.xlane.xlu0 %1573
      %v1575 = vmul.f32 %v1529, %v589
      %v1576 = vmul.f32 %v1532, %v589
      %v1577 = vmul.f32 %v1535, %v589
      %v1578 = vmul.f32 %v1538, %v589
      %v1579 = vmul.f32 %v1541, %v589
      %v1580 = vmul.f32 %v1544, %v589
      %v1581 = vmul.f32 %v1547, %v589
      %v1582 = vmul.f32 %v1550, %v589
      %v1583 = vmul.f32 %v1553, %v589
      %v1584 = vmul.f32 %v1556, %v589
      %v1585 = vmul.f32 %v1559, %v589
      %v1586 = vmul.f32 %v1562, %v589
      %v1587 = vmul.f32 %v1565, %v589
      %v1588 = vmul.f32 %v1568, %v589
      %v1589 = vmul.f32 %v1571, %v589
      %v1590 = vmul.f32 %v1574, %v589
      %v1591 = vsub.f32 %v1511, %v1575
      %v1592 = vsub.f32 %v1512, %v1576
      %v1593 = vsub.f32 %v1513, %v1577
      %v1594 = vsub.f32 %v1514, %v1578
      %v1595 = vsub.f32 %v1515, %v1579
      %v1596 = vsub.f32 %v1516, %v1580
      %v1597 = vsub.f32 %v1517, %v1581
      %v1598 = vsub.f32 %v1518, %v1582
      %v1599 = vsub.f32 %v1519, %v1583
      %v1600 = vsub.f32 %v1520, %v1584
      %v1601 = vsub.f32 %v1521, %v1585
      %v1602 = vsub.f32 %v1522, %v1586
      %v1603 = vsub.f32 %v1523, %v1587
      %v1604 = vsub.f32 %v1524, %v1588
      %v1605 = vsub.f32 %v1525, %v1589
      %v1606 = vsub.f32 %v1526, %v1590
      %v1607 = vmul.f32 %v1591, %v1591
      %v1608 = vmul.f32 %v1592, %v1592
      %v1609 = vmul.f32 %v1593, %v1593
      %v1610 = vmul.f32 %v1594, %v1594
      %v1611 = vmul.f32 %v1595, %v1595
      %v1612 = vmul.f32 %v1596, %v1596
      %v1613 = vmul.f32 %v1597, %v1597
      %v1614 = vmul.f32 %v1598, %v1598
      %v1615 = vmul.f32 %v1599, %v1599
      %v1616 = vmul.f32 %v1600, %v1600
      %v1617 = vmul.f32 %v1601, %v1601
      %v1618 = vmul.f32 %v1602, %v1602
      %v1619 = vmul.f32 %v1603, %v1603
      %v1620 = vmul.f32 %v1604, %v1604
      %v1621 = vmul.f32 %v1605, %v1605
      %v1622 = vmul.f32 %v1606, %v1606
      %v1623 = vsel %vm534, %v1607, 0.0
      %1624 = vadd.xlane.f32.xlu0 %v1623
      %v1625 = vpop.xlane.xlu0 %1624
      %v1626 = vsel %vm534, %v1608, 0.0
      %1627 = vadd.xlane.f32.xlu0 %v1626
      %v1628 = vpop.xlane.xlu0 %1627
      %v1629 = vsel %vm534, %v1609, 0.0
      %1630 = vadd.xlane.f32.xlu0 %v1629
      %v1631 = vpop.xlane.xlu0 %1630
      %v1632 = vsel %vm534, %v1610, 0.0
      %1633 = vadd.xlane.f32.xlu0 %v1632
      %v1634 = vpop.xlane.xlu0 %1633
      %v1635 = vsel %vm534, %v1611, 0.0
      %1636 = vadd.xlane.f32.xlu0 %v1635
      %v1637 = vpop.xlane.xlu0 %1636
      %v1638 = vsel %vm534, %v1612, 0.0
      %1639 = vadd.xlane.f32.xlu0 %v1638
      %v1640 = vpop.xlane.xlu0 %1639
      %v1641 = vsel %vm534, %v1613, 0.0
      %1642 = vadd.xlane.f32.xlu0 %v1641
      %v1643 = vpop.xlane.xlu0 %1642
      %v1644 = vsel %vm534, %v1614, 0.0
      %1645 = vadd.xlane.f32.xlu0 %v1644
      %v1646 = vpop.xlane.xlu0 %1645
      %v1647 = vsel %vm534, %v1615, 0.0
      %1648 = vadd.xlane.f32.xlu0 %v1647
      %v1649 = vpop.xlane.xlu0 %1648
      %v1650 = vsel %vm534, %v1616, 0.0
      %1651 = vadd.xlane.f32.xlu0 %v1650
      %v1652 = vpop.xlane.xlu0 %1651
      %v1653 = vsel %vm534, %v1617, 0.0
      %1654 = vadd.xlane.f32.xlu0 %v1653
      %v1655 = vpop.xlane.xlu0 %1654
      %v1656 = vsel %vm534, %v1618, 0.0
      %1657 = vadd.xlane.f32.xlu0 %v1656
      %v1658 = vpop.xlane.xlu0 %1657
      %v1659 = vsel %vm534, %v1619, 0.0
      %1660 = vadd.xlane.f32.xlu0 %v1659
      %v1661 = vpop.xlane.xlu0 %1660
      %v1662 = vsel %vm534, %v1620, 0.0
      %1663 = vadd.xlane.f32.xlu0 %v1662
      %v1664 = vpop.xlane.xlu0 %1663
      %v1665 = vsel %vm534, %v1621, 0.0
      %1666 = vadd.xlane.f32.xlu0 %v1665
      %v1667 = vpop.xlane.xlu0 %1666
      %v1668 = vsel %vm534, %v1622, 0.0
      %1669 = vadd.xlane.f32.xlu0 %v1668
      %v1670 = vpop.xlane.xlu0 %1669
      %v1671 = vmul.f32 %v1625, %v589
      %v1672 = vmul.f32 %v1628, %v589
      %v1673 = vmul.f32 %v1631, %v589
      %v1674 = vmul.f32 %v1634, %v589
      %v1675 = vmul.f32 %v1637, %v589
      %v1676 = vmul.f32 %v1640, %v589
      %v1677 = vmul.f32 %v1643, %v589
      %v1678 = vmul.f32 %v1646, %v589
      %v1679 = vmul.f32 %v1649, %v589
      %v1680 = vmul.f32 %v1652, %v589
      %v1681 = vmul.f32 %v1655, %v589
      %v1682 = vmul.f32 %v1658, %v589
      %v1683 = vmul.f32 %v1661, %v589
      %v1684 = vmul.f32 %v1664, %v589
      %v1685 = vmul.f32 %v1667, %v589
      %v1686 = vmul.f32 %v1670, %v589
      %v1687 = vadd.f32 %v1671, 1e-05
      %v1688 = vadd.f32 %v1672, 1e-05
      %v1689 = vadd.f32 %v1673, 1e-05
      %v1690 = vadd.f32 %v1674, 1e-05
      %v1691 = vadd.f32 %v1675, 1e-05
      %v1692 = vadd.f32 %v1676, 1e-05
      %v1693 = vadd.f32 %v1677, 1e-05
      %v1694 = vadd.f32 %v1678, 1e-05
      %v1695 = vadd.f32 %v1679, 1e-05
      %v1696 = vadd.f32 %v1680, 1e-05
      %v1697 = vadd.f32 %v1681, 1e-05
      %v1698 = vadd.f32 %v1682, 1e-05
      %v1699 = vadd.f32 %v1683, 1e-05
      %v1700 = vadd.f32 %v1684, 1e-05
      %v1701 = vadd.f32 %v1685, 1e-05
      %v1702 = vadd.f32 %v1686, 1e-05
      %v1703 = vrsqrt.pop %v1687
      %v1704 = vmul.f32 %v1703, %v1687
      %v1705 = vmul.f32 %v1704, %v1703
      %v1706 = vmul.f32 0.5, %v1705
      %v1707 = vsub.f32 1.5, %v1706
      %v1708 = vmul.f32 %v1703, %v1707
      %vm1709 = vweird.f32 %v1687
      %vm1710 = vweird.f32 %v1703
      %vm1711 = vmor %vm1709, %vm1710
      %v1712 = vsel %vm1711, %v1703, %v1708
      %v1713 = vrsqrt.pop %v1688
      %v1714 = vmul.f32 %v1713, %v1688
      %v1715 = vmul.f32 %v1714, %v1713
      %v1716 = vmul.f32 0.5, %v1715
      %v1717 = vsub.f32 1.5, %v1716
      %v1718 = vmul.f32 %v1713, %v1717
      %vm1719 = vweird.f32 %v1688
      %vm1720 = vweird.f32 %v1713
      %vm1721 = vmor %vm1719, %vm1720
      %v1722 = vsel %vm1721, %v1713, %v1718
      %v1723 = vrsqrt.pop %v1689
      %v1724 = vmul.f32 %v1723, %v1689
      %v1725 = vmul.f32 %v1724, %v1723
      %v1726 = vmul.f32 0.5, %v1725
      %v1727 = vsub.f32 1.5, %v1726
      %v1728 = vmul.f32 %v1723, %v1727
      %vm1729 = vweird.f32 %v1689
      %vm1730 = vweird.f32 %v1723
      %vm1731 = vmor %vm1729, %vm1730
      %v1732 = vsel %vm1731, %v1723, %v1728
      %v1733 = vrsqrt.pop %v1690
      %v1734 = vmul.f32 %v1733, %v1690
      %v1735 = vmul.f32 %v1734, %v1733
      %v1736 = vmul.f32 0.5, %v1735
      %v1737 = vsub.f32 1.5, %v1736
      %v1738 = vmul.f32 %v1733, %v1737
      %vm1739 = vweird.f32 %v1690
      %vm1740 = vweird.f32 %v1733
      %vm1741 = vmor %vm1739, %vm1740
      %v1742 = vsel %vm1741, %v1733, %v1738
      %v1743 = vrsqrt.pop %v1691
      %v1744 = vmul.f32 %v1743, %v1691
      %v1745 = vmul.f32 %v1744, %v1743
      %v1746 = vmul.f32 0.5, %v1745
      %v1747 = vsub.f32 1.5, %v1746
      %v1748 = vmul.f32 %v1743, %v1747
      %vm1749 = vweird.f32 %v1691
      %vm1750 = vweird.f32 %v1743
      %vm1751 = vmor %vm1749, %vm1750
      %v1752 = vsel %vm1751, %v1743, %v1748
      %v1753 = vrsqrt.pop %v1692
      %v1754 = vmul.f32 %v1753, %v1692
      %v1755 = vmul.f32 %v1754, %v1753
      %v1756 = vmul.f32 0.5, %v1755
      %v1757 = vsub.f32 1.5, %v1756
      %v1758 = vmul.f32 %v1753, %v1757
      %vm1759 = vweird.f32 %v1692
      %vm1760 = vweird.f32 %v1753
      %vm1761 = vmor %vm1759, %vm1760
      %v1762 = vsel %vm1761, %v1753, %v1758
      %v1763 = vrsqrt.pop %v1693
      %v1764 = vmul.f32 %v1763, %v1693
      %v1765 = vmul.f32 %v1764, %v1763
      %v1766 = vmul.f32 0.5, %v1765
      %v1767 = vsub.f32 1.5, %v1766
      %v1768 = vmul.f32 %v1763, %v1767
      %vm1769 = vweird.f32 %v1693
      %vm1770 = vweird.f32 %v1763
      %vm1771 = vmor %vm1769, %vm1770
      %v1772 = vsel %vm1771, %v1763, %v1768
      %v1773 = vrsqrt.pop %v1694
      %v1774 = vmul.f32 %v1773, %v1694
      %v1775 = vmul.f32 %v1774, %v1773
      %v1776 = vmul.f32 0.5, %v1775
      %v1777 = vsub.f32 1.5, %v1776
      %v1778 = vmul.f32 %v1773, %v1777
      %vm1779 = vweird.f32 %v1694
      %vm1780 = vweird.f32 %v1773
      %vm1781 = vmor %vm1779, %vm1780
      %v1782 = vsel %vm1781, %v1773, %v1778
      %v1783 = vrsqrt.pop %v1695
      %v1784 = vmul.f32 %v1783, %v1695
      %v1785 = vmul.f32 %v1784, %v1783
      %v1786 = vmul.f32 0.5, %v1785
      %v1787 = vsub.f32 1.5, %v1786
      %v1788 = vmul.f32 %v1783, %v1787
      %vm1789 = vweird.f32 %v1695
      %vm1790 = vweird.f32 %v1783
      %vm1791 = vmor %vm1789, %vm1790
      %v1792 = vsel %vm1791, %v1783, %v1788
      %v1793 = vrsqrt.pop %v1696
      %v1794 = vmul.f32 %v1793, %v1696
      %v1795 = vmul.f32 %v1794, %v1793
      %v1796 = vmul.f32 0.5, %v1795
      %v1797 = vsub.f32 1.5, %v1796
      %v1798 = vmul.f32 %v1793, %v1797
      %vm1799 = vweird.f32 %v1696
      %vm1800 = vweird.f32 %v1793
      %vm1801 = vmor %vm1799, %vm1800
      %v1802 = vsel %vm1801, %v1793, %v1798
      %v1803 = vrsqrt.pop %v1697
      %v1804 = vmul.f32 %v1803, %v1697
      %v1805 = vmul.f32 %v1804, %v1803
      %v1806 = vmul.f32 0.5, %v1805
      %v1807 = vsub.f32 1.5, %v1806
      %v1808 = vmul.f32 %v1803, %v1807
      %vm1809 = vweird.f32 %v1697
      %vm1810 = vweird.f32 %v1803
      %vm1811 = vmor %vm1809, %vm1810
      %v1812 = vsel %vm1811, %v1803, %v1808
      %v1813 = vrsqrt.pop %v1698
      %v1814 = vmul.f32 %v1813, %v1698
      %v1815 = vmul.f32 %v1814, %v1813
      %v1816 = vmul.f32 0.5, %v1815
      %v1817 = vsub.f32 1.5, %v1816
      %v1818 = vmul.f32 %v1813, %v1817
      %vm1819 = vweird.f32 %v1698
      %vm1820 = vweird.f32 %v1813
      %vm1821 = vmor %vm1819, %vm1820
      %v1822 = vsel %vm1821, %v1813, %v1818
      %v1823 = vrsqrt.pop %v1699
      %v1824 = vmul.f32 %v1823, %v1699
      %v1825 = vmul.f32 %v1824, %v1823
      %v1826 = vmul.f32 0.5, %v1825
      %v1827 = vsub.f32 1.5, %v1826
      %v1828 = vmul.f32 %v1823, %v1827
      %vm1829 = vweird.f32 %v1699
      %vm1830 = vweird.f32 %v1823
      %vm1831 = vmor %vm1829, %vm1830
      %v1832 = vsel %vm1831, %v1823, %v1828
      %v1833 = vrsqrt.pop %v1700
      %v1834 = vmul.f32 %v1833, %v1700
      %v1835 = vmul.f32 %v1834, %v1833
      %v1836 = vmul.f32 0.5, %v1835
      %v1837 = vsub.f32 1.5, %v1836
      %v1838 = vmul.f32 %v1833, %v1837
      %vm1839 = vweird.f32 %v1700
      %vm1840 = vweird.f32 %v1833
      %vm1841 = vmor %vm1839, %vm1840
      %v1842 = vsel %vm1841, %v1833, %v1838
      %v1843 = vrsqrt.pop %v1701
      %v1844 = vmul.f32 %v1843, %v1701
      %v1845 = vmul.f32 %v1844, %v1843
      %v1846 = vmul.f32 0.5, %v1845
      %v1847 = vsub.f32 1.5, %v1846
      %v1848 = vmul.f32 %v1843, %v1847
      %vm1849 = vweird.f32 %v1701
      %vm1850 = vweird.f32 %v1843
      %vm1851 = vmor %vm1849, %vm1850
      %v1852 = vsel %vm1851, %v1843, %v1848
      %v1853 = vrsqrt.pop %v1702
      %v1854 = vmul.f32 %v1853, %v1702
      %v1855 = vmul.f32 %v1854, %v1853
      %v1856 = vmul.f32 0.5, %v1855
      %v1857 = vsub.f32 1.5, %v1856
      %v1858 = vmul.f32 %v1853, %v1857
      %vm1859 = vweird.f32 %v1702
      %vm1860 = vweird.f32 %v1853
      %vm1861 = vmor %vm1859, %vm1860
      %v1862 = vsel %vm1861, %v1853, %v1858
      %v1863 = vmul.f32 %v1591, %v1712
      %v1864 = vmul.f32 %v1592, %v1722
      %v1865 = vmul.f32 %v1593, %v1732
      %v1866 = vmul.f32 %v1594, %v1742
      %v1867 = vmul.f32 %v1595, %v1752
      %v1868 = vmul.f32 %v1596, %v1762
      %v1869 = vmul.f32 %v1597, %v1772
      %v1870 = vmul.f32 %v1598, %v1782
      %v1871 = vmul.f32 %v1599, %v1792
      %v1872 = vmul.f32 %v1600, %v1802
      %v1873 = vmul.f32 %v1601, %v1812
      %v1874 = vmul.f32 %v1602, %v1822
      %v1875 = vmul.f32 %v1603, %v1832
      %v1876 = vmul.f32 %v1604, %v1842
      %v1877 = vmul.f32 %v1605, %v1852
      %v1878 = vmul.f32 %v1606, %v1862
      %v1879 = vperm.slane %v393, 3
      %v1880 = vmul.f32 %v1863, %v1879
      %v1881 = vmul.f32 %v1864, %v1879
      %v1882 = vmul.f32 %v1865, %v1879
      %v1883 = vmul.f32 %v1866, %v1879
      %v1884 = vmul.f32 %v1867, %v1879
      %v1885 = vmul.f32 %v1868, %v1879
      %v1886 = vmul.f32 %v1869, %v1879
      %v1887 = vmul.f32 %v1870, %v1879
      %v1888 = vmul.f32 %v1871, %v1879
      %v1889 = vmul.f32 %v1872, %v1879
      %v1890 = vmul.f32 %v1873, %v1879
      %v1891 = vmul.f32 %v1874, %v1879
      %v1892 = vmul.f32 %v1875, %v1879
      %v1893 = vmul.f32 %v1876, %v1879
      %v1894 = vmul.f32 %v1877, %v1879
      %v1895 = vmul.f32 %v1878, %v1879
      %v1896 = vperm.slane %v393, 4
      %v1897 = vadd.f32 %v1880, %v1896
      %v1898 = vadd.f32 %v1881, %v1896
      %v1899 = vadd.f32 %v1882, %v1896
      %v1900 = vadd.f32 %v1883, %v1896
      %v1901 = vadd.f32 %v1884, %v1896
      %v1902 = vadd.f32 %v1885, %v1896
      %v1903 = vadd.f32 %v1886, %v1896
      %v1904 = vadd.f32 %v1887, %v1896
      %v1905 = vadd.f32 %v1888, %v1896
      %v1906 = vadd.f32 %v1889, %v1896
      %v1907 = vadd.f32 %v1890, %v1896
      %v1908 = vadd.f32 %v1891, %v1896
      %v1909 = vadd.f32 %v1892, %v1896
      %v1910 = vadd.f32 %v1893, %v1896
      %v1911 = vadd.f32 %v1894, %v1896
      %v1912 = vadd.f32 %v1895, %v1896
      %v1913 = vpack.c.bf16 %v1898, %v1897
      %v1914 = vpack.c.bf16 %v1900, %v1899
      %v1915 = vpack.c.bf16 %v1902, %v1901
      %v1916 = vpack.c.bf16 %v1904, %v1903
      %v1917 = vpack.c.bf16 %v1906, %v1905
      %v1918 = vpack.c.bf16 %v1908, %v1907
      %v1919 = vpack.c.bf16 %v1910, %v1909
      %v1920 = vpack.c.bf16 %v1912, %v1911
      %v1921 = vld [vmem:[%s6] sm:$0xf]
      %v1922 = vld [vmem:[%s6 + $0x4] sm:$0xf]
      %v1923 = vld [vmem:[%s6 + $0x8] sm:$0xf]
      %v1924 = vld [vmem:[%s6 + $0xc] sm:$0xf]
      %v1925 = vperm.slane %v393, 5
      %v1930 = vunpack.c.l.b16 %v1921
      %v1931 = vunpack.c.l.b16 %v1922
      %v1932 = vunpack.c.l.b16 %v1923
      %v1933 = vunpack.c.l.b16 %v1924
      %v1934 = vpack.c.b16 %v1931, %v1930
      %v1935 = vpack.c.b16 %v1933, %v1932
      %v1939 = vsel %vm534, %v1913, 0
      %v1942 = vsel %vm534, %v1914, 0
      %v1945 = vsel %vm534, %v1915, 0
      %v1948 = vsel %vm534, %v1916, 0
      %v1951 = vsel %vm534, %v1917, 0
      %v1954 = vsel %vm534, %v1918, 0
      %v1957 = vsel %vm534, %v1919, 0
      %v1960 = vsel %vm534, %v1920, 0
      %1962 = vmatpush.bf16.msra.mxu0 0
      %1963 = vmatpush.bf16.msra.mxu0 0
      %1964 = vmatpush.bf16.msra.mxu0 0
      %1965 = vmatpush.bf16.msra.mxu0 0
      %1966 = vmatpush.bf16.msra.mxu0 0
      %1967 = vmatpush.bf16.msra.mxu0 0
      %1968 = vmatpush.bf16.msra.mxu0 %v1935
      %1969 = vmatpush.bf16.msra.mxu0 %v1934
      %1970 = vmatmul.bf16.gmra.mxu0 %v1939
      %v1971 = vpop.f32.mrf.mxu0
      %v1972 = vadd.f32 %v1925, %v1971
      %v1973 = vpop.f32.mrf.mxu0
      %v1974 = vadd.f32 %v1925, %v1973
      %1975 = vmatmul.bf16.gmra.mxu0 %v1942
      %v1976 = vpop.f32.mrf.mxu0
      %v1977 = vadd.f32 %v1925, %v1976
      %v1978 = vpop.f32.mrf.mxu0
      %v1979 = vadd.f32 %v1925, %v1978
      %1980 = vmatmul.bf16.gmra.mxu0 %v1945
      %v1981 = vpop.f32.mrf.mxu0
      %v1982 = vadd.f32 %v1925, %v1981
      %v1983 = vpop.f32.mrf.mxu0
      %v1984 = vadd.f32 %v1925, %v1983
      %1985 = vmatmul.bf16.gmra.mxu0 %v1948
      %v1986 = vpop.f32.mrf.mxu0
      %v1987 = vadd.f32 %v1925, %v1986
      %v1988 = vpop.f32.mrf.mxu0
      %v1989 = vadd.f32 %v1925, %v1988
      %1990 = vmatmul.bf16.gmra.mxu0 %v1951
      %v1991 = vpop.f32.mrf.mxu0
      %v1992 = vadd.f32 %v1925, %v1991
      %v1993 = vpop.f32.mrf.mxu0
      %v1994 = vadd.f32 %v1925, %v1993
      %1995 = vmatmul.bf16.gmra.mxu0 %v1954
      %v1996 = vpop.f32.mrf.mxu0
      %v1997 = vadd.f32 %v1925, %v1996
      %v1998 = vpop.f32.mrf.mxu0
      %v1999 = vadd.f32 %v1925, %v1998
      %2000 = vmatmul.bf16.gmra.mxu0 %v1957
      %v2001 = vpop.f32.mrf.mxu0
      %v2002 = vadd.f32 %v1925, %v2001
      %v2003 = vpop.f32.mrf.mxu0
      %v2004 = vadd.f32 %v1925, %v2003
      %2005 = vmatmul.bf16.gmra.mxu0 %v1960
      %v2006 = vpop.f32.mrf.mxu0
      %v2007 = vadd.f32 %v1925, %v2006
      %v2008 = vpop.f32.mrf.mxu0
      %v2009 = vadd.f32 %v1925, %v2008
      %2010 = vdwg.mxu0
      %v2011 = vmax.f32 %v1972, 0.0
      %v2012 = vmax.f32 %v1974, 0.0
      %v2013 = vmax.f32 %v1977, 0.0
      %v2014 = vmax.f32 %v1979, 0.0
      %v2015 = vmax.f32 %v1982, 0.0
      %v2016 = vmax.f32 %v1984, 0.0
      %v2017 = vmax.f32 %v1987, 0.0
      %v2018 = vmax.f32 %v1989, 0.0
      %v2019 = vmax.f32 %v1992, 0.0
      %v2020 = vmax.f32 %v1994, 0.0
      %v2021 = vmax.f32 %v1997, 0.0
      %v2022 = vmax.f32 %v1999, 0.0
      %v2023 = vmax.f32 %v2002, 0.0
      %v2024 = vmax.f32 %v2004, 0.0
      %v2025 = vmax.f32 %v2007, 0.0
      %v2026 = vmax.f32 %v2009, 0.0
      %v2027 = vpack.c.bf16 %v2012, %v2011
      %v2028 = vpack.c.bf16 %v2014, %v2013
      %v2029 = vpack.c.bf16 %v2016, %v2015
      %v2030 = vpack.c.bf16 %v2018, %v2017
      %v2031 = vpack.c.bf16 %v2020, %v2019
      %v2032 = vpack.c.bf16 %v2022, %v2021
      %v2033 = vpack.c.bf16 %v2024, %v2023
      %v2034 = vpack.c.bf16 %v2026, %v2025
      %v2035 = vld [vmem:[%s7] sm:$0xf]
      %v2036 = vld [vmem:[%s7 + $0x4] sm:$0xf]
      %v2037 = vld [vmem:[%s7 + $0x8] sm:$0xf]
      %v2038 = vld [vmem:[%s7 + $0xc] sm:$0xf]
      %v2039 = vld [vmem:[%s7 + $0x10] sm:$0xf]
      %v2040 = vld [vmem:[%s7 + $0x14] sm:$0xf]
      %v2041 = vld [vmem:[%s7 + $0x18] sm:$0xf]
      %v2042 = vld [vmem:[%s7 + $0x1c] sm:$0xf]
      %v2051 = vunpack.c.l.b16 %v2035
      %v2052 = vunpack.c.l.b16 %v2036
      %v2053 = vunpack.c.l.b16 %v2037
      %v2054 = vunpack.c.l.b16 %v2038
      %v2055 = vunpack.c.l.b16 %v2039
      %v2056 = vunpack.c.l.b16 %v2040
      %v2057 = vunpack.c.l.b16 %v2041
      %v2058 = vunpack.c.l.b16 %v2042
      %v2059 = vpack.c.b16 %v2052, %v2051
      %v2060 = vpack.c.b16 %v2054, %v2053
      %v2061 = vpack.c.b16 %v2056, %v2055
      %v2062 = vpack.c.b16 %v2058, %v2057
      %vm2067 = vcmask 523264
      %v2069 = vsel %vm2067, %v2027, 0
      %v2072 = vsel %vm2067, %v2028, 0
      %v2075 = vsel %vm2067, %v2029, 0
      %v2078 = vsel %vm2067, %v2030, 0
      %v2081 = vsel %vm2067, %v2031, 0
      %v2084 = vsel %vm2067, %v2032, 0
      %v2087 = vsel %vm2067, %v2033, 0
      %v2090 = vsel %vm2067, %v2034, 0
      %2092 = vmatpush.bf16.msra.mxu0 0
      %2093 = vmatpush.bf16.msra.mxu0 0
      %2094 = vmatpush.bf16.msra.mxu0 0
      %2095 = vmatpush.bf16.msra.mxu0 0
      %2096 = vmatpush.bf16.msra.mxu0 %v2062
      %2097 = vmatpush.bf16.msra.mxu0 %v2061
      %2098 = vmatpush.bf16.msra.mxu0 %v2060
      %2099 = vmatpush.bf16.msra.mxu0 %v2059
      %2100 = vmatmul.bf16.gmra.mxu0 %v2069
      %v2101 = vpop.f32.mrf.mxu0
      %v2102 = vadd.f32 0.0, %v2101
      %v2103 = vpop.f32.mrf.mxu0
      %v2104 = vadd.f32 0.0, %v2103
      %2105 = vmatmul.bf16.gmra.mxu0 %v2072
      %v2106 = vpop.f32.mrf.mxu0
      %v2107 = vadd.f32 0.0, %v2106
      %v2108 = vpop.f32.mrf.mxu0
      %v2109 = vadd.f32 0.0, %v2108
      %2110 = vmatmul.bf16.gmra.mxu0 %v2075
      %v2111 = vpop.f32.mrf.mxu0
      %v2112 = vadd.f32 0.0, %v2111
      %v2113 = vpop.f32.mrf.mxu0
      %v2114 = vadd.f32 0.0, %v2113
      %2115 = vmatmul.bf16.gmra.mxu0 %v2078
      %v2116 = vpop.f32.mrf.mxu0
      %v2117 = vadd.f32 0.0, %v2116
      %v2118 = vpop.f32.mrf.mxu0
      %v2119 = vadd.f32 0.0, %v2118
      %2120 = vmatmul.bf16.gmra.mxu0 %v2081
      %v2121 = vpop.f32.mrf.mxu0
      %v2122 = vadd.f32 0.0, %v2121
      %v2123 = vpop.f32.mrf.mxu0
      %v2124 = vadd.f32 0.0, %v2123
      %2125 = vmatmul.bf16.gmra.mxu0 %v2084
      %v2126 = vpop.f32.mrf.mxu0
      %v2127 = vadd.f32 0.0, %v2126
      %v2128 = vpop.f32.mrf.mxu0
      %v2129 = vadd.f32 0.0, %v2128
      %2130 = vmatmul.bf16.gmra.mxu0 %v2087
      %v2131 = vpop.f32.mrf.mxu0
      %v2132 = vadd.f32 0.0, %v2131
      %v2133 = vpop.f32.mrf.mxu0
      %v2134 = vadd.f32 0.0, %v2133
      %2135 = vmatmul.bf16.gmra.mxu0 %v2090
      %v2136 = vpop.f32.mrf.mxu0
      %v2137 = vadd.f32 0.0, %v2136
      %v2138 = vpop.f32.mrf.mxu0
      %v2139 = vadd.f32 0.0, %v2138
      %2140 = vdwg.mxu0
      %v2141 = vadd.f32 %v1511, %v2102
      %v2142 = vadd.f32 %v1512, %v2104
      %v2143 = vadd.f32 %v1513, %v2107
      %v2144 = vadd.f32 %v1514, %v2109
      %v2145 = vadd.f32 %v1515, %v2112
      %v2146 = vadd.f32 %v1516, %v2114
      %v2147 = vadd.f32 %v1517, %v2117
      %v2148 = vadd.f32 %v1518, %v2119
      %v2149 = vadd.f32 %v1519, %v2122
      %v2150 = vadd.f32 %v1520, %v2124
      %v2151 = vadd.f32 %v1521, %v2127
      %v2152 = vadd.f32 %v1522, %v2129
      %v2153 = vadd.f32 %v1523, %v2132
      %v2154 = vadd.f32 %v1524, %v2134
      %v2155 = vadd.f32 %v1525, %v2137
      %v2156 = vadd.f32 %v1526, %v2139
      %v2157 = vperm.slane %v393, 6
      %v2158 = vadd.f32 %v2141, %v2157
      %v2159 = vadd.f32 %v2142, %v2157
      %v2160 = vadd.f32 %v2143, %v2157
      %v2161 = vadd.f32 %v2144, %v2157
      %v2162 = vadd.f32 %v2145, %v2157
      %v2163 = vadd.f32 %v2146, %v2157
      %v2164 = vadd.f32 %v2147, %v2157
      %v2165 = vadd.f32 %v2148, %v2157
      %v2166 = vadd.f32 %v2149, %v2157
      %v2167 = vadd.f32 %v2150, %v2157
      %v2168 = vadd.f32 %v2151, %v2157
      %v2169 = vadd.f32 %v2152, %v2157
      %v2170 = vadd.f32 %v2153, %v2157
      %v2171 = vadd.f32 %v2154, %v2157
      %v2172 = vadd.f32 %v2155, %v2157
      %v2173 = vadd.f32 %v2156, %v2157
      %v2174 = vld [vmem:[%s8] sm:$0xf]
      %v2175 = vpack.c.bf16 %v2159, %v2158
      %v2176 = vpack.c.bf16 %v2161, %v2160
      %v2177 = vpack.c.bf16 %v2163, %v2162
      %v2178 = vpack.c.bf16 %v2165, %v2164
      %v2179 = vpack.c.bf16 %v2167, %v2166
      %v2180 = vpack.c.bf16 %v2169, %v2168
      %v2181 = vpack.c.bf16 %v2171, %v2170
      %v2182 = vpack.c.bf16 %v2173, %v2172
      %v2184 = vsel %vm534, %v2174, 0
      %v2187 = vsel %vm534, %v2175, 0
      %v2190 = vsel %vm534, %v2176, 0
      %v2193 = vsel %vm534, %v2177, 0
      %v2196 = vsel %vm534, %v2178, 0
      %v2199 = vsel %vm534, %v2179, 0
      %v2202 = vsel %vm534, %v2180, 0
      %v2205 = vsel %vm534, %v2181, 0
      %v2208 = vsel %vm534, %v2182, 0
      %2210 = vmatpush.bf16.xpose.msra.mxu0 %v2208
      %2211 = vmatpush.bf16.xpose.msra.mxu0 %v2205
      %2212 = vmatpush.bf16.xpose.msra.mxu0 %v2202
      %2213 = vmatpush.bf16.xpose.msra.mxu0 %v2199
      %2214 = vmatpush.bf16.xpose.msra.mxu0 %v2196
      %2215 = vmatpush.bf16.xpose.msra.mxu0 %v2193
      %2216 = vmatpush.bf16.xpose.msra.mxu0 %v2190
      %2217 = vmatpush.bf16.xpose.msra.mxu0 %v2187
      %2218 = vmatmul.bf16.gmra.mxu0 %v2184
      %v2219 = vpop.f32.mrf.mxu0
      %v2220 = vadd.f32 0.0, %v2219
      %v2221 = vpop.f32.mrf.mxu0
      %2222 = vdwg.mxu0
      %v2223 = vadd.f32 %v2220, %v394
      %v2224 = vmax.f32 %v2223, 0.0
      %v2225 = vand.u32 2147483647, %v2223
      %v2226 = vsub.f32 0.0, %v2225
      %v2227 = vmul.f32 %v2226, 1.442695
      %v2228 = vpow.pop %v2227
      %v2229 = vadd.f32 %v2228, 1.0
      %v2230 = vlog2.pop %v2229
      %v2231 = vmul.f32 %v2230, 0.6931472
      %v2232 = vmul.f32 -0.5, %v2228
      %v2233 = vadd.f32 %v2232, 1.0
      %v2234 = vmul.f32 %v2233, %v2228
      %v2235 = vand.u32 2147483647, %v2228
      %vm2236 = vcmp.lt.f32.partialorder %v2235, 0.0004427343
      %v2237 = vsel %vm2236, %v2234, %v2231
      %v2238 = vadd.f32 %v2224, %v2237
      %v2239 = vadd.f32 %v2238, 0.001
      %v2240 = vld [vmem:[%s383] sm:$0x1]
      %v2241 = vld [vmem:[%s383 + $0x1] sm:$0x1]
      %v2242 = vld [vmem:[%s387] sm:$0xff]
      %v2243 = vperm.slane %v2239, 1
      %v2244 = vmul.f32 %v2243, %v2242
      %v2245 = vperm.slane %v2223, 0
      %v2246 = vadd.f32 %v2245, %v2244
      %v2247 = vmul.f32 %v2241, %v2240
      %v2248 = vsub.f32 1.0, %v2241
      %v2249 = vperm.slane %v2248, 0
      %v2250 = vmul.f32 %v2249, %v2246
      %v2251 = vperm.slane %v2247, 0
      %v2252 = vadd.f32 %v2251, %v2250
      %2253 = vst [vmem:[%s391] sm:$0xff] %v2252
      %p2254 = scmp.lt.s32.totalorder %s21, 1
      %s2255 = scalar_select %p2254, %s21, 1
      %s2256 = smul.addr %s2255, 8
      %s2257 = scalar_lea.vmem %s10, %s2256
      // Predicated region
      $region61: #{_tactis_interpolation_forward.1} parent=59 // pred_check
        %p2258 = pneg %p264
      $region62: #{_tactis_interpolation_forward.1} parent=59 // pred_check_branch
        %2260 = sbr.rel (%p2258) target = $region64
      $region63: #{_tactis_interpolation_forward.1} parent=59 // pred_region
        _
      $region64: #{_tactis_interpolation_forward.1} parent=59 // pred_fallthru
        _
    $region60: #{_tactis_interpolation_forward.1} parent=5 // pred_fallthru
      _
    %p2261 = scmp.le.s32.totalorder 2, %s16
    // Predicated region
    $region65: #{_tactis_interpolation_forward.1} parent=5 // pred_check
      %p2262 = pneg %p2261
    $region66: #{_tactis_interpolation_forward.1} parent=5 // pred_check_branch
      %2264 = sbr.rel (%p2262) target = $region68
    $region67: #{_tactis_interpolation_forward.1} parent=5 // pred_region
      %s2265 = ssub.s32 %s16, 2
      // Predicated region
      $region69: #{_tactis_interpolation_forward.1} parent=67 // pred_check
        %p2266 = pneg %p270
      $region70: #{_tactis_interpolation_forward.1} parent=67 // pred_check_branch
        %2268 = sbr.rel (%p2266) target = $region72
      $region71: #{_tactis_interpolation_forward.1} parent=67 // pred_region
        %p2269 = scmp.lt.s32.totalorder %s22, 1
        %s2270 = scalar_select %p2269, %s22, 1
        %s2271 = smul.addr %s2270, 8
        %s2272 = scalar_lea.vmem %s10, %s2271
      $region72: #{_tactis_interpolation_forward.1} parent=67 // pred_fallthru
        _
    $region68: #{_tactis_interpolation_forward.1} parent=5 // pred_fallthru
      _
  $region6: #{_tactis_interpolation_forward.1} parent=0 // loop_footer
    %s20 = sadd.s32 1, %s16
  $region7: #{_tactis_interpolation_forward.1} parent=0 // loop_footer_branch
    %15 = sbr.rel target = $region3
  $region8: #{_tactis_interpolation_forward.1} parent=0 // loop_exit
    _

</llo_original>
